<compile_context>
chip_gen: v6e
topology: v6e:2x2x1
jax: 0.10.0
libtpu: 0.0.40
codegen_flags: <defaults>
</compile_context>

<pallas_src>
import math
import functools

import jax
import jax.numpy as jnp
from jax import lax
from jax.experimental import pallas as pl
from jax.experimental.pallas import tpu as pltpu


_LANE = 128   # lane width (last-dim alignment)
_SUB = 8      # sublane width (second-to-last-dim alignment, f32)


def _round_up(n, m):
    return ((n + m - 1) // m) * m


def _chunk_layout(sizes, align):
    """Assign aligned offsets for named chunks packed along one axis."""
    offs, off = {}, 0
    for name, size in sizes:
        offs[name] = off
        off += _round_up(size, align)
    return offs, off


def _layouts(in_dim, D, H, d_ff, B, S):
    BS = B * S
    w_off, w_cols = _chunk_layout(
        [('wqkv', 3 * D), ('wo', D), ('ffw1', d_ff), ('ffw2', D)], _LANE)
    v_off, v_cols = _chunk_layout(
        [('bqkv', 3 * D), ('bo', D), ('ln1g', D), ('ln1b', D),
         ('ffb1', d_ff), ('ffb2', D), ('ln2g', D), ('ln2b', D)], _LANE)
    f_off, f_rows = _chunk_layout([('embw', in_dim), ('pebias', BS)], _SUB)
    t_off, t_rows = _chunk_layout(
        [('hsum', D), ('hexp', H), ('sel', B), ('outw', D), ('outb', 1)], _SUB)
    return dict(w_off=w_off, w_cols=w_cols, w_rows=_round_up(max(D, d_ff), _SUB),
                v_off=v_off, v_cols=v_cols,
                f_off=f_off, f_rows=f_rows,
                t_off=t_off, t_rows=t_rows)


# ----------------------------- fused Pallas kernel ------------------------------

def make_fused_forward_kernel(B, S, in_dim, D, H, d_ff, L):
    BS = B * S
    lay = _layouts(in_dim, D, H, d_ff, B, S)
    wcol, vcol, fo, to = lay['w_off'], lay['v_off'], lay['f_off'], lay['t_off']

    def layer_norm(z, gamma, beta, eps=1e-5):
        # PyTorch LayerNorm: biased variance, eps inside the sqrt.
        mu = jnp.mean(z, axis=-1, keepdims=True)
        var = jnp.mean(jnp.square(z - mu), axis=-1, keepdims=True)
        return (z - mu) * lax.rsqrt(var + eps) * gamma + beta

    def kernel(x_ref, front_ref, lw_ref, lv_ref, tail_ref, o_ref):
        # ---- embedding + (positional encoding + embedding bias) additive table ----
        h = jnp.dot(x_ref[...],
                    front_ref[fo['embw']:fo['embw'] + in_dim, :],
                    preferred_element_type=jnp.float32)
        h = h + front_ref[fo['pebias']:fo['pebias'] + BS, :]          # (BS, D)

        hsum = tail_ref[to['hsum']:to['hsum'] + D, 0:H]               # (D, H) per-head sum
        hexp = tail_ref[to['hexp']:to['hexp'] + H, 0:D]               # (H, D) per-head expand

        for li in range(L):      # statically unrolled; all weights stay in VMEM
            # ---- packed QKV projection (1/sqrt(head_dim) folded into Q cols) ----
            qkv = (jnp.dot(h, lw_ref[li, 0:D, wcol['wqkv']:wcol['wqkv'] + 3 * D],
                           preferred_element_type=jnp.float32)
                   + lv_ref[li, :, vcol['bqkv']:vcol['bqkv'] + 3 * D])
            q = qkv[:, 0:D]
            k = qkv[:, D:2 * D]
            v = qkv[:, 2 * D:3 * D]

            # ---- multi-head attention over the *batch* axis ----
            # (reproduces the reference's batch_first=False quirk: every seq position
            #  attends across the B batch entries, per head)
            # One loop over roll offsets instead of a b x bp double loop: offset d
            # pairs every (b, s) query with the key/value of batch (b -/+ d) % B at
            # the same seq position.  Shifts are sublane-aligned (multiples of S),
            # so the rolls ride the otherwise-idle XLU slot.
            scores, vals = [], []
            for d in range(B):
                if d == 0:
                    kd, vd = k, v
                else:
                    kd = pltpu.roll(k, shift=d * S, axis=0)
                    vd = pltpu.roll(v, shift=d * S, axis=0)
                vals.append(vd)
                scores.append(jnp.dot(q * kd, hsum,
                                      preferred_element_type=jnp.float32))  # (BS, H)

            smax = scores[0]
            for sc in scores[1:]:
                smax = jnp.maximum(smax, sc)
            exps = [jnp.exp(sc - smax) for sc in scores]
            denom = exps[0]
            for e in exps[1:]:
                denom = denom + e
            inv = pl.reciprocal(denom, approx=True)          # EUP slot, frees VALU

            attn = None
            for d in range(B):
                p_full = jnp.dot(exps[d] * inv, hexp,
                                 preferred_element_type=jnp.float32)        # (BS, D)
                term = p_full * vals[d]
                attn = term if attn is None else attn + term

            attn_out = (jnp.dot(attn, lw_ref[li, 0:D, wcol['wo']:wcol['wo'] + D],
                                preferred_element_type=jnp.float32)
                        + lv_ref[li, :, vcol['bo']:vcol['bo'] + D])
            # dropout == identity (eval mode); residual + LayerNorm
            h = layer_norm(h + attn_out,
                           lv_ref[li, :, vcol['ln1g']:vcol['ln1g'] + D],
                           lv_ref[li, :, vcol['ln1b']:vcol['ln1b'] + D])

            # ---- feed-forward ----
            ff = (jnp.dot(h, lw_ref[li, 0:D, wcol['ffw1']:wcol['ffw1'] + d_ff],
                          preferred_element_type=jnp.float32)
                  + lv_ref[li, :, vcol['ffb1']:vcol['ffb1'] + d_ff])
            ff = jnp.maximum(ff, 0.0)
            ff = (jnp.dot(ff, lw_ref[li, 0:d_ff, wcol['ffw2']:wcol['ffw2'] + D],
                          preferred_element_type=jnp.float32)
                  + lv_ref[li, :, vcol['ffb2']:vcol['ffb2'] + D])
            h = layer_norm(h + ff,
                           lv_ref[li, :, vcol['ln2g']:vcol['ln2g'] + D],
                           lv_ref[li, :, vcol['ln2b']:vcol['ln2b'] + D])

        # ---- last-token select (x[:, -1, :]) + output head (lane-padded to 128) ----
        last = jnp.dot(tail_ref[to['sel']:to['sel'] + B, 0:BS], h,
                       preferred_element_type=jnp.float32)                   # (B, D)
        o_ref[...] = (jnp.dot(last, tail_ref[to['outw']:to['outw'] + D, :],
                              preferred_element_type=jnp.float32)
                      + tail_ref[to['outb']:to['outb'] + 1, :])

    return kernel


# -------------------------- one-time parameter packing --------------------------

def prepare_params(params, B, S):
    """Pack all weights/constants into a few aligned VMEM slabs.  Called ONCE."""
    in_dim, D = params['emb_w'].shape
    H = params['num_heads']
    hd = D // H
    d_ff = params['layers'][0]['ff_w1'].shape[1]
    L = len(params['layers'])
    BS = B * S
    lay = _layouts(in_dim, D, H, d_ff, B, S)
    scale = 1.0 / math.sqrt(hd)

    # front slab: embedding weight + (PE + embedding bias) additive table
    fo = lay['f_off']
    front = jnp.zeros((lay['f_rows'], D), jnp.float32)
    front = front.at[fo['embw']:fo['embw'] + in_dim, :].set(params['emb_w'])
    pe_bias = jnp.tile(params['pe'][:S, :], (B, 1)) + params['emb_b'][None, :]
    front = front.at[fo['pebias']:fo['pebias'] + BS, :].set(pe_bias)

    # per-layer weight / vector slabs (Q scale folded into wqkv / bqkv)
    wcol, vcol = lay['w_off'], lay['v_off']
    lw = jnp.zeros((L, lay['w_rows'], lay['w_cols']), jnp.float32)
    lv = jnp.zeros((L, 1, lay['v_cols']), jnp.float32)
    for li, lp in enumerate(params['layers']):
        wqkv = lp['wqkv'].at[:, 0:D].multiply(scale)
        bqkv = lp['bqkv'].at[0:D].multiply(scale)
        lw = lw.at[li, 0:D, wcol['wqkv']:wcol['wqkv'] + 3 * D].set(wqkv)
        lw = lw.at[li, 0:D, wcol['wo']:wcol['wo'] + D].set(lp['wo'])
        lw = lw.at[li, 0:D, wcol['ffw1']:wcol['ffw1'] + d_ff].set(lp['ff_w1'])
        lw = lw.at[li, 0:d_ff, wcol['ffw2']:wcol['ffw2'] + D].set(lp['ff_w2'])
        for name, val in (('bqkv', bqkv), ('bo', lp['bo']),
                          ('ln1g', lp['ln1_g']), ('ln1b', lp['ln1_b']),
                          ('ffb1', lp['ff_b1']), ('ffb2', lp['ff_b2']),
                          ('ln2g', lp['ln2_g']), ('ln2b', lp['ln2_b'])):
            lv = lv.at[li, 0, vcol[name]:vcol[name] + val.shape[0]].set(val)

    # constant tail slab: per-head segment matrices, last-token selector, output head
    to = lay['t_off']
    head_ids = jnp.arange(D) // hd
    hsum = (head_ids[:, None] == jnp.arange(H)[None, :]).astype(jnp.float32)   # (D, H)
    last_rows = jnp.arange(B) * S + (S - 1)
    sel = (last_rows[:, None] == jnp.arange(BS)[None, :]).astype(jnp.float32)  # (B, BS)
    tail = jnp.zeros((lay['t_rows'], _LANE), jnp.float32)
    tail = tail.at[to['hsum']:to['hsum'] + D, 0:H].set(hsum)
    tail = tail.at[to['hexp']:to['hexp'] + H, 0:D].set(hsum.T)
    tail = tail.at[to['sel']:to['sel'] + B, 0:BS].set(sel)
    tail = tail.at[to['outw']:to['outw'] + D, 0:1].set(params['out_w'])
    tail = tail.at[to['outb'], 0].set(params['out_b'][0])

    packed = tuple(jax.device_put(a) for a in (front, lw, lv, tail))
    meta = dict(B=B, S=S, in_dim=in_dim, D=D, H=H, d_ff=d_ff, L=L)
    return packed, meta


# ------------------------------- forward wrapper --------------------------------

def make_forward_fn(meta):
    B, S = meta['B'], meta['S']
    in_dim, D, H = meta['in_dim'], meta['D'], meta['H']
    d_ff, L = meta['d_ff'], meta['L']
    BS = B * S
    OUT_PAD = _LANE
    lay = _layouts(in_dim, D, H, d_ff, B, S)

    kern = make_fused_forward_kernel(B, S, in_dim, D, H, d_ff, L)

    shapes = ((BS, in_dim),
              (lay['f_rows'], D),
              (L, lay['w_rows'], lay['w_cols']),
              (L, 1, lay['v_cols']),
              (lay['t_rows'], OUT_PAD))

    def full_spec(shape):
        nd = len(shape)
        return pl.BlockSpec(shape, lambda i, _nd=nd: (0,) * _nd)

    flops = int(2 * BS * in_dim * D
                + L * (2 * BS * D * 3 * D          # packed QKV
                       + 4 * B * BS * D * H        # attention scores + PV
                       + 2 * BS * D * D            # output projection
                       + 4 * BS * D * d_ff)        # FF1 + FF2
                + 2 * B * BS * D + 2 * B * D * OUT_PAD)
    transcendentals = int(L * (B * BS * H + BS * H + 2 * BS))
    bytes_accessed = int(sum(math.prod(s) for s in shapes) * 4 + B * OUT_PAD * 4)

    pc = pl.pallas_call(
        kern,
        out_shape=jax.ShapeDtypeStruct((B, OUT_PAD), jnp.float32),
        grid=(1,),
        in_specs=[full_spec(s) for s in shapes],
        out_specs=pl.BlockSpec((B, OUT_PAD), lambda i: (0, 0)),
        compiler_params=pltpu.CompilerParams(dimension_semantics=("arbitrary",)),
        cost_estimate=pl.CostEstimate(flops=flops,
                                      transcendentals=transcendentals,
                                      bytes_accessed=bytes_accessed),
    )

    # TODO(synk): for large B*S add a leading row-tile grid axis marked "parallel"
    # (uses both v7x TensorCores); for large d_model/d_ff keep only one layer's
    # weights resident and double-buffer the next layer via pltpu.make_async_copy.
    @jax.jit
    def forward(x, front, lw, lv, tail):
        x2d = x.reshape(BS, in_dim).astype(jnp.float32)
        out_pad = pc(x2d, front, lw, lv, tail)
        return out_pad[:, 0:1]                      # real output lives in lane 0

    return forward


# --------------------------------- params ------------------------------------

def init_params(key, input_dim, d_model, num_heads, d_ff, num_layers, max_len=100):
    ks = iter(jax.random.split(key, 4 + num_layers * 8))

    def w(shape, scale=0.05):
        return jax.random.normal(next(ks), shape, jnp.float32) * scale

    params = {
        'num_heads': num_heads,
        'emb_w': w((input_dim, d_model)), 'emb_b': w((d_model,)),
        'out_w': w((d_model, 1)),         'out_b': w((1,)),
    }

    # sinusoidal positional-encoding table (matches PositionalEncoding.__init__)
    pos = jnp.arange(max_len, dtype=jnp.float32)[:, None]
    div = jnp.exp(-jnp.arange(0, d_model, 2, dtype=jnp.float32)
                  * (math.log(10000.0) / d_model))
    pe = jnp.zeros((max_len, d_model), jnp.float32)
    pe = pe.at[:, 0::2].set(jnp.sin(pos * div))
    pe = pe.at[:, 1::2].set(jnp.cos(pos * div))
    params['pe'] = pe

    layers = []
    for _ in range(num_layers):
        layers.append({
            'wqkv': w((d_model, 3 * d_model)), 'bqkv': w((3 * d_model,)),
            'wo': w((d_model, d_model)),       'bo': w((d_model,)),
            'ln1_g': jnp.ones((d_model,), jnp.float32),
            'ln1_b': jnp.zeros((d_model,), jnp.float32),
            'ff_w1': w((d_model, d_ff)), 'ff_b1': w((d_ff,)),
            'ff_w2': w((d_ff, d_model)), 'ff_b2': w((d_model,)),
            'ln2_g': jnp.ones((d_model,), jnp.float32),
            'ln2_b': jnp.zeros((d_model,), jnp.float32),
        })
    params['layers'] = layers
    return params


# -------------------------- pure-JAX reference (check) ------------------------

def reference_forward(x, params):
    B, S, in_dim = x.shape
    D = params['emb_w'].shape[1]
    H = params['num_heads']
    hd = D // H
    dot = functools.partial(jnp.dot, precision=lax.Precision.HIGHEST)

    def ln(z, g, b):
        mu = jnp.mean(z, axis=-1, keepdims=True)
        var = jnp.mean(jnp.square(z - mu), axis=-1, keepdims=True)
        return (z - mu) / jnp.sqrt(var + 1e-5) * g + b

    h = dot(x.reshape(B * S, in_dim), params['emb_w']) + params['emb_b']
    h = h.reshape(B, S, D) + params['pe'][None, :S, :]
    for lp in params['layers']:
        h2 = h.reshape(B * S, D)
        qkv = dot(h2, lp['wqkv']) + lp['bqkv']
        q, k, v = qkv[:, :D], qkv[:, D:2 * D], qkv[:, 2 * D:]
        qh = q.reshape(B, S, H, hd) / math.sqrt(hd)
        kh = k.reshape(B, S, H, hd)
        vh = v.reshape(B, S, H, hd)
        # attention over the batch axis (batch_first=False quirk)
        scores = jnp.einsum('bshd,cshd->shbc', qh, kh,
                            precision=lax.Precision.HIGHEST)
        p = jax.nn.softmax(scores, axis=-1)
        out = jnp.einsum('shbc,cshd->bshd', p, vh,
                         precision=lax.Precision.HIGHEST).reshape(B * S, D)
        attn_out = dot(out, lp['wo']) + lp['bo']
        h2 = ln(h2 + attn_out, lp['ln1_g'], lp['ln1_b'])
        ff = jnp.maximum(dot(h2, lp['ff_w1']) + lp['ff_b1'], 0.0)
        ff = dot(ff, lp['ff_w2']) + lp['ff_b2']
        h2 = ln(h2 + ff, lp['ln2_g'], lp['ln2_b'])
        h = h2.reshape(B, S, D)
    last = h[:, -1, :]
    return dot(last, params['out_w']) + params['out_b']


# ----------------------------------- main -------------------------------------

if __name__ == "__main__":
    # TransformerModel(input_dim=16, d_model=32, num_heads=4, d_ff=64,
    #                  num_layers=2, dropout=0.1)
    B, S = 2, 8
    input_dim, d_model, num_heads, d_ff, num_layers = 16, 32, 4, 64, 2

    key = jax.random.PRNGKey(0)
    kx, kp = jax.random.split(key)
    x = jax.random.normal(kx, (B, S, input_dim), jnp.float32)
    params = init_params(kp, input_dim, d_model, num_heads, d_ff, num_layers)

    # one-time packing (hoisted out of the per-call hot path)
    packed, meta = prepare_params(params, B, S)
    forward = make_forward_fn(meta)

    out = forward(x, *packed)
    out = jax.block_until_ready(out)
    assert out.shape == (B, 1), out.shape
    assert bool(jnp.all(jnp.isfinite(out)))

    # numerical check against a pure-JAX reference (approx reciprocal -> loose tol)
    ref = reference_forward(x, params)
    max_err = float(jnp.max(jnp.abs(out - ref)))
    assert max_err < 2e-2, f"mismatch vs reference: {max_err}"

    # second call exercises the cached-jit / no-repacking hot path
    out2 = jax.block_until_ready(forward(x, *packed))
    assert out2.shape == (B, 1)

    print("KERNEL_OK")
</pallas_src>

<mosaic_0001>
module attributes {stable_mosaic.version = 11 : i64} {
  func.func @kernel(%arg0: i32, %arg1: memref<16x16xf32, #tpu.memory_space<vmem>>, %arg2: memref<32x32xf32, #tpu.memory_space<vmem>>, %arg3: memref<2x64x512xf32, #tpu.memory_space<vmem>>, %arg4: memref<2x1x1024xf32, #tpu.memory_space<vmem>>, %arg5: memref<88x128xf32, #tpu.memory_space<vmem>>, %arg6: memref<2x128xf32, #tpu.memory_space<vmem>>) attributes {dimension_semantics = [#tpu.dimension_semantics<arbitrary>], iteration_bounds = array<i64: 1>, scalar_prefetch = 0 : i64, scratch_operands = 0 : i64, tpu.core_type = #tpu.core_type<tc>, window_params = [{pipeline_mode = #tpu.pipeline_mode<synchronous>, transform_indices = @transform_0, window_bounds = array<i64: 16, 16>}, {pipeline_mode = #tpu.pipeline_mode<synchronous>, transform_indices = @transform_1, window_bounds = array<i64: 32, 32>}, {pipeline_mode = #tpu.pipeline_mode<synchronous>, transform_indices = @transform_2, window_bounds = array<i64: 2, 64, 512>}, {pipeline_mode = #tpu.pipeline_mode<synchronous>, transform_indices = @transform_3, window_bounds = array<i64: 2, 1, 1024>}, {pipeline_mode = #tpu.pipeline_mode<synchronous>, transform_indices = @transform_4, window_bounds = array<i64: 88, 128>}, {pipeline_mode = #tpu.pipeline_mode<synchronous>, transform_indices = @transform_5, window_bounds = array<i64: 2, 128>}]} {
    %c0 = arith.constant 0 : index
    %c0_0 = arith.constant 0 : index
    %0 = vector.load %arg1[%c0, %c0_0] : memref<16x16xf32, #tpu.memory_space<vmem>>, vector<16x16xf32>
    %c0_1 = arith.constant 0 : index
    %c0_2 = arith.constant 0 : index
    %1 = vector.load %arg2[%c0_1, %c0_2] : memref<32x32xf32, #tpu.memory_space<vmem>>, vector<16x32xf32>
    %cst = arith.constant dense<0.000000e+00> : vector<16x32xf32>
    %2 = tpu.matmul %0, %1, %cst {dimension_numbers = #tpu.dot_dimension_numbers<[1], [0], [0], [1], [0, 0, 1, 1], [], []>} : vector<16x16xf32>, vector<16x32xf32>, vector<16x32xf32> -> vector<16x32xf32>
    %c16 = arith.constant 16 : index
    %c0_3 = arith.constant 0 : index
    %3 = vector.load %arg2[%c16, %c0_3] : memref<32x32xf32, #tpu.memory_space<vmem>>, vector<16x32xf32>
    %4 = arith.addf %2, %3 : vector<16x32xf32>
    %c0_4 = arith.constant 0 : index
    %c0_5 = arith.constant 0 : index
    %5 = vector.load %arg5[%c0_4, %c0_5] : memref<88x128xf32, #tpu.memory_space<vmem>>, vector<32x4xf32>
    %c32 = arith.constant 32 : index
    %c0_6 = arith.constant 0 : index
    %6 = vector.load %arg5[%c32, %c0_6] : memref<88x128xf32, #tpu.memory_space<vmem>>, vector<4x32xf32>
    %c0_7 = arith.constant 0 : index
    %c0_8 = arith.constant 0 : index
    %c0_9 = arith.constant 0 : index
    %7 = vector.load %arg3[%c0_7, %c0_8, %c0_9] : memref<2x64x512xf32, #tpu.memory_space<vmem>>, vector<1x32x96xf32>
    %8 = vector.shape_cast %7 : vector<1x32x96xf32> to vector<32x96xf32>
    %cst_10 = arith.constant dense<0.000000e+00> : vector<16x96xf32>
    %9 = tpu.matmul %4, %8, %cst_10 {dimension_numbers = #tpu.dot_dimension_numbers<[1], [0], [0], [1], [0, 0, 1, 1], [], []>} : vector<16x32xf32>, vector<32x96xf32>, vector<16x96xf32> -> vector<16x96xf32>
    %c0_11 = arith.constant 0 : index
    %c0_12 = arith.constant 0 : index
    %c0_13 = arith.constant 0 : index
    %10 = vector.load %arg4[%c0_11, %c0_12, %c0_13] : memref<2x1x1024xf32, #tpu.memory_space<vmem>>, vector<1x1x96xf32>
    %11 = vector.shape_cast %10 : vector<1x1x96xf32> to vector<1x96xf32>
    %12 = vector.broadcast %11 : vector<1x96xf32> to vector<16x96xf32>
    %13 = arith.addf %9, %12 : vector<16x96xf32>
    %14 = vector.extract_strided_slice %13 {offsets = [0, 0], sizes = [16, 32], strides = [1, 1]} : vector<16x96xf32> to vector<16x32xf32>
    %15 = vector.extract_strided_slice %13 {offsets = [0, 32], sizes = [16, 32], strides = [1, 1]} : vector<16x96xf32> to vector<16x32xf32>
    %16 = vector.extract_strided_slice %13 {offsets = [0, 64], sizes = [16, 32], strides = [1, 1]} : vector<16x96xf32> to vector<16x32xf32>
    %17 = arith.mulf %14, %15 : vector<16x32xf32>
    %cst_14 = arith.constant dense<0.000000e+00> : vector<16x4xf32>
    %18 = tpu.matmul %17, %5, %cst_14 {dimension_numbers = #tpu.dot_dimension_numbers<[1], [0], [0], [1], [0, 0, 1, 1], [], []>} : vector<16x32xf32>, vector<32x4xf32>, vector<16x4xf32> -> vector<16x4xf32>
    %c8_i32 = arith.constant 8 : i32
    %19 = tpu.dynamic_rotate %15 by %c8_i32 dim 0 : vector<16x32xf32>, i32 -> vector<16x32xf32>
    %c8_i32_15 = arith.constant 8 : i32
    %20 = tpu.dynamic_rotate %16 by %c8_i32_15 dim 0 : vector<16x32xf32>, i32 -> vector<16x32xf32>
    %21 = arith.mulf %14, %19 : vector<16x32xf32>
    %cst_16 = arith.constant dense<0.000000e+00> : vector<16x4xf32>
    %22 = tpu.matmul %21, %5, %cst_16 {dimension_numbers = #tpu.dot_dimension_numbers<[1], [0], [0], [1], [0, 0, 1, 1], [], []>} : vector<16x32xf32>, vector<32x4xf32>, vector<16x4xf32> -> vector<16x4xf32>
    %23 = arith.maximumf %18, %22 : vector<16x4xf32>
    %24 = arith.subf %18, %23 : vector<16x4xf32>
    %25 = math.exp %24 : vector<16x4xf32>
    %26 = arith.subf %22, %23 : vector<16x4xf32>
    %27 = math.exp %26 : vector<16x4xf32>
    %28 = arith.addf %25, %27 : vector<16x4xf32>
    %29 = tpu.reciprocal %28 {approx = true} : vector<16x4xf32> -> vector<16x4xf32>
    %30 = arith.mulf %25, %29 : vector<16x4xf32>
    %cst_17 = arith.constant dense<0.000000e+00> : vector<16x32xf32>
    %31 = tpu.matmul %30, %6, %cst_17 {dimension_numbers = #tpu.dot_dimension_numbers<[1], [0], [0], [1], [0, 0, 1, 1], [], []>} : vector<16x4xf32>, vector<4x32xf32>, vector<16x32xf32> -> vector<16x32xf32>
    %32 = arith.mulf %31, %16 : vector<16x32xf32>
    %33 = arith.mulf %27, %29 : vector<16x4xf32>
    %cst_18 = arith.constant dense<0.000000e+00> : vector<16x32xf32>
    %34 = tpu.matmul %33, %6, %cst_18 {dimension_numbers = #tpu.dot_dimension_numbers<[1], [0], [0], [1], [0, 0, 1, 1], [], []>} : vector<16x4xf32>, vector<4x32xf32>, vector<16x32xf32> -> vector<16x32xf32>
    %35 = arith.mulf %34, %20 : vector<16x32xf32>
    %36 = arith.addf %32, %35 : vector<16x32xf32>
    %c0_19 = arith.constant 0 : index
    %c0_20 = arith.constant 0 : index
    %c128 = arith.constant 128 : index
    %37 = vector.load %arg3[%c0_19, %c0_20, %c128] : memref<2x64x512xf32, #tpu.memory_space<vmem>>, vector<1x32x32xf32>
    %38 = vector.shape_cast %37 : vector<1x32x32xf32> to vector<32x32xf32>
    %cst_21 = arith.constant dense<0.000000e+00> : vector<16x32xf32>
    %39 = tpu.matmul %36, %38, %cst_21 {dimension_numbers = #tpu.dot_dimension_numbers<[1], [0], [0], [1], [0, 0, 1, 1], [], []>} : vector<16x32xf32>, vector<32x32xf32>, vector<16x32xf32> -> vector<16x32xf32>
    %c0_22 = arith.constant 0 : index
    %c0_23 = arith.constant 0 : index
    %c128_24 = arith.constant 128 : index
    %40 = vector.load %arg4[%c0_22, %c0_23, %c128_24] : memref<2x1x1024xf32, #tpu.memory_space<vmem>>, vector<1x1x32xf32>
    %41 = vector.shape_cast %40 : vector<1x1x32xf32> to vector<1x32xf32>
    %42 = vector.broadcast %41 : vector<1x32xf32> to vector<16x32xf32>
    %43 = arith.addf %39, %42 : vector<16x32xf32>
    %44 = arith.addf %4, %43 : vector<16x32xf32>
    %c0_25 = arith.constant 0 : index
    %c0_26 = arith.constant 0 : index
    %c256 = arith.constant 256 : index
    %45 = vector.load %arg4[%c0_25, %c0_26, %c256] : memref<2x1x1024xf32, #tpu.memory_space<vmem>>, vector<1x1x32xf32>
    %46 = vector.shape_cast %45 : vector<1x1x32xf32> to vector<1x32xf32>
    %c0_27 = arith.constant 0 : index
    %c0_28 = arith.constant 0 : index
    %c384 = arith.constant 384 : index
    %47 = vector.load %arg4[%c0_27, %c0_28, %c384] : memref<2x1x1024xf32, #tpu.memory_space<vmem>>, vector<1x1x32xf32>
    %48 = vector.shape_cast %47 : vector<1x1x32xf32> to vector<1x32xf32>
    %cst_29 = arith.constant dense<0.000000e+00> : vector<16xf32>
    %49 = vector.multi_reduction <add>, %44, %cst_29 [1] : vector<16x32xf32> to vector<16xf32>
    %50 = vector.shape_cast %49 : vector<16xf32> to vector<16x1xf32>
    %cst_30 = arith.constant 3.200000e+01 : f32
    %51 = vector.broadcast %cst_30 : f32 to vector<16x1xf32>
    %52 = arith.divf %50, %51 : vector<16x1xf32>
    %53 = vector.broadcast %52 : vector<16x1xf32> to vector<16x32xf32>
    %54 = arith.subf %44, %53 : vector<16x32xf32>
    %55 = arith.mulf %54, %54 : vector<16x32xf32>
    %cst_31 = arith.constant dense<0.000000e+00> : vector<16xf32>
    %56 = vector.multi_reduction <add>, %55, %cst_31 [1] : vector<16x32xf32> to vector<16xf32>
    %57 = vector.shape_cast %56 : vector<16xf32> to vector<16x1xf32>
    %cst_32 = arith.constant 3.200000e+01 : f32
    %58 = vector.broadcast %cst_32 : f32 to vector<16x1xf32>
    %59 = arith.divf %57, %58 : vector<16x1xf32>
    %60 = vector.broadcast %52 : vector<16x1xf32> to vector<16x32xf32>
    %61 = arith.subf %44, %60 : vector<16x32xf32>
    %cst_33 = arith.constant 9.99999974E-6 : f32
    %62 = vector.broadcast %cst_33 : f32 to vector<16x1xf32>
    %63 = arith.addf %59, %62 : vector<16x1xf32>
    %64 = math.rsqrt %63 : vector<16x1xf32>
    %65 = vector.broadcast %64 : vector<16x1xf32> to vector<16x32xf32>
    %66 = arith.mulf %61, %65 : vector<16x32xf32>
    %67 = vector.broadcast %46 : vector<1x32xf32> to vector<16x32xf32>
    %68 = arith.mulf %66, %67 : vector<16x32xf32>
    %69 = vector.broadcast %48 : vector<1x32xf32> to vector<16x32xf32>
    %70 = arith.addf %68, %69 : vector<16x32xf32>
    %c0_34 = arith.constant 0 : index
    %c0_35 = arith.constant 0 : index
    %c256_36 = arith.constant 256 : index
    %71 = vector.load %arg3[%c0_34, %c0_35, %c256_36] : memref<2x64x512xf32, #tpu.memory_space<vmem>>, vector<1x32x64xf32>
    %72 = vector.shape_cast %71 : vector<1x32x64xf32> to vector<32x64xf32>
    %cst_37 = arith.constant dense<0.000000e+00> : vector<16x64xf32>
    %73 = tpu.matmul %70, %72, %cst_37 {dimension_numbers = #tpu.dot_dimension_numbers<[1], [0], [0], [1], [0, 0, 1, 1], [], []>} : vector<16x32xf32>, vector<32x64xf32>, vector<16x64xf32> -> vector<16x64xf32>
    %c0_38 = arith.constant 0 : index
    %c0_39 = arith.constant 0 : index
    %c512 = arith.constant 512 : index
    %74 = vector.load %arg4[%c0_38, %c0_39, %c512] : memref<2x1x1024xf32, #tpu.memory_space<vmem>>, vector<1x1x64xf32>
    %75 = vector.shape_cast %74 : vector<1x1x64xf32> to vector<1x64xf32>
    %76 = vector.broadcast %75 : vector<1x64xf32> to vector<16x64xf32>
    %77 = arith.addf %73, %76 : vector<16x64xf32>
    %cst_40 = arith.constant 0.000000e+00 : f32
    %78 = vector.broadcast %cst_40 : f32 to vector<16x64xf32>
    %79 = arith.maximumf %77, %78 : vector<16x64xf32>
    %c0_41 = arith.constant 0 : index
    %c0_42 = arith.constant 0 : index
    %c384_43 = arith.constant 384 : index
    %80 = vector.load %arg3[%c0_41, %c0_42, %c384_43] : memref<2x64x512xf32, #tpu.memory_space<vmem>>, vector<1x64x32xf32>
    %81 = vector.shape_cast %80 : vector<1x64x32xf32> to vector<64x32xf32>
    %cst_44 = arith.constant dense<0.000000e+00> : vector<16x32xf32>
    %82 = tpu.matmul %79, %81, %cst_44 {dimension_numbers = #tpu.dot_dimension_numbers<[1], [0], [0], [1], [0, 0, 1, 1], [], []>} : vector<16x64xf32>, vector<64x32xf32>, vector<16x32xf32> -> vector<16x32xf32>
    %c0_45 = arith.constant 0 : index
    %c0_46 = arith.constant 0 : index
    %c640 = arith.constant 640 : index
    %83 = vector.load %arg4[%c0_45, %c0_46, %c640] : memref<2x1x1024xf32, #tpu.memory_space<vmem>>, vector<1x1x32xf32>
    %84 = vector.shape_cast %83 : vector<1x1x32xf32> to vector<1x32xf32>
    %85 = vector.broadcast %84 : vector<1x32xf32> to vector<16x32xf32>
    %86 = arith.addf %82, %85 : vector<16x32xf32>
    %87 = arith.addf %70, %86 : vector<16x32xf32>
    %c0_47 = arith.constant 0 : index
    %c0_48 = arith.constant 0 : index
    %c768 = arith.constant 768 : index
    %88 = vector.load %arg4[%c0_47, %c0_48, %c768] : memref<2x1x1024xf32, #tpu.memory_space<vmem>>, vector<1x1x32xf32>
    %89 = vector.shape_cast %88 : vector<1x1x32xf32> to vector<1x32xf32>
    %c0_49 = arith.constant 0 : index
    %c0_50 = arith.constant 0 : index
    %c896 = arith.constant 896 : index
    %90 = vector.load %arg4[%c0_49, %c0_50, %c896] : memref<2x1x1024xf32, #tpu.memory_space<vmem>>, vector<1x1x32xf32>
    %91 = vector.shape_cast %90 : vector<1x1x32xf32> to vector<1x32xf32>
    %cst_51 = arith.constant dense<0.000000e+00> : vector<16xf32>
    %92 = vector.multi_reduction <add>, %87, %cst_51 [1] : vector<16x32xf32> to vector<16xf32>
    %93 = vector.shape_cast %92 : vector<16xf32> to vector<16x1xf32>
    %cst_52 = arith.constant 3.200000e+01 : f32
    %94 = vector.broadcast %cst_52 : f32 to vector<16x1xf32>
    %95 = arith.divf %93, %94 : vector<16x1xf32>
    %96 = vector.broadcast %95 : vector<16x1xf32> to vector<16x32xf32>
    %97 = arith.subf %87, %96 : vector<16x32xf32>
    %98 = arith.mulf %97, %97 : vector<16x32xf32>
    %cst_53 = arith.constant dense<0.000000e+00> : vector<16xf32>
    %99 = vector.multi_reduction <add>, %98, %cst_53 [1] : vector<16x32xf32> to vector<16xf32>
    %100 = vector.shape_cast %99 : vector<16xf32> to vector<16x1xf32>
    %cst_54 = arith.constant 3.200000e+01 : f32
    %101 = vector.broadcast %cst_54 : f32 to vector<16x1xf32>
    %102 = arith.divf %100, %101 : vector<16x1xf32>
    %103 = vector.broadcast %95 : vector<16x1xf32> to vector<16x32xf32>
    %104 = arith.subf %87, %103 : vector<16x32xf32>
    %cst_55 = arith.constant 9.99999974E-6 : f32
    %105 = vector.broadcast %cst_55 : f32 to vector<16x1xf32>
    %106 = arith.addf %102, %105 : vector<16x1xf32>
    %107 = math.rsqrt %106 : vector<16x1xf32>
    %108 = vector.broadcast %107 : vector<16x1xf32> to vector<16x32xf32>
    %109 = arith.mulf %104, %108 : vector<16x32xf32>
    %110 = vector.broadcast %89 : vector<1x32xf32> to vector<16x32xf32>
    %111 = arith.mulf %109, %110 : vector<16x32xf32>
    %112 = vector.broadcast %91 : vector<1x32xf32> to vector<16x32xf32>
    %113 = arith.addf %111, %112 : vector<16x32xf32>
    %c1 = arith.constant 1 : index
    %c0_56 = arith.constant 0 : index
    %c0_57 = arith.constant 0 : index
    %114 = vector.load %arg3[%c1, %c0_56, %c0_57] : memref<2x64x512xf32, #tpu.memory_space<vmem>>, vector<1x32x96xf32>
    %115 = vector.shape_cast %114 : vector<1x32x96xf32> to vector<32x96xf32>
    %cst_58 = arith.constant dense<0.000000e+00> : vector<16x96xf32>
    %116 = tpu.matmul %113, %115, %cst_58 {dimension_numbers = #tpu.dot_dimension_numbers<[1], [0], [0], [1], [0, 0, 1, 1], [], []>} : vector<16x32xf32>, vector<32x96xf32>, vector<16x96xf32> -> vector<16x96xf32>
    %c1_59 = arith.constant 1 : index
    %c0_60 = arith.constant 0 : index
    %c0_61 = arith.constant 0 : index
    %117 = vector.load %arg4[%c1_59, %c0_60, %c0_61] : memref<2x1x1024xf32, #tpu.memory_space<vmem>>, vector<1x1x96xf32>
    %118 = vector.shape_cast %117 : vector<1x1x96xf32> to vector<1x96xf32>
    %119 = vector.broadcast %118 : vector<1x96xf32> to vector<16x96xf32>
    %120 = arith.addf %116, %119 : vector<16x96xf32>
    %121 = vector.extract_strided_slice %120 {offsets = [0, 0], sizes = [16, 32], strides = [1, 1]} : vector<16x96xf32> to vector<16x32xf32>
    %122 = vector.extract_strided_slice %120 {offsets = [0, 32], sizes = [16, 32], strides = [1, 1]} : vector<16x96xf32> to vector<16x32xf32>
    %123 = vector.extract_strided_slice %120 {offsets = [0, 64], sizes = [16, 32], strides = [1, 1]} : vector<16x96xf32> to vector<16x32xf32>
    %124 = arith.mulf %121, %122 : vector<16x32xf32>
    %cst_62 = arith.constant dense<0.000000e+00> : vector<16x4xf32>
    %125 = tpu.matmul %124, %5, %cst_62 {dimension_numbers = #tpu.dot_dimension_numbers<[1], [0], [0], [1], [0, 0, 1, 1], [], []>} : vector<16x32xf32>, vector<32x4xf32>, vector<16x4xf32> -> vector<16x4xf32>
    %c8_i32_63 = arith.constant 8 : i32
    %126 = tpu.dynamic_rotate %122 by %c8_i32_63 dim 0 : vector<16x32xf32>, i32 -> vector<16x32xf32>
    %c8_i32_64 = arith.constant 8 : i32
    %127 = tpu.dynamic_rotate %123 by %c8_i32_64 dim 0 : vector<16x32xf32>, i32 -> vector<16x32xf32>
    %128 = arith.mulf %121, %126 : vector<16x32xf32>
    %cst_65 = arith.constant dense<0.000000e+00> : vector<16x4xf32>
    %129 = tpu.matmul %128, %5, %cst_65 {dimension_numbers = #tpu.dot_dimension_numbers<[1], [0], [0], [1], [0, 0, 1, 1], [], []>} : vector<16x32xf32>, vector<32x4xf32>, vector<16x4xf32> -> vector<16x4xf32>
    %130 = arith.maximumf %125, %129 : vector<16x4xf32>
    %131 = arith.subf %125, %130 : vector<16x4xf32>
    %132 = math.exp %131 : vector<16x4xf32>
    %133 = arith.subf %129, %130 : vector<16x4xf32>
    %134 = math.exp %133 : vector<16x4xf32>
    %135 = arith.addf %132, %134 : vector<16x4xf32>
    %136 = tpu.reciprocal %135 {approx = true} : vector<16x4xf32> -> vector<16x4xf32>
    %137 = arith.mulf %132, %136 : vector<16x4xf32>
    %cst_66 = arith.constant dense<0.000000e+00> : vector<16x32xf32>
    %138 = tpu.matmul %137, %6, %cst_66 {dimension_numbers = #tpu.dot_dimension_numbers<[1], [0], [0], [1], [0, 0, 1, 1], [], []>} : vector<16x4xf32>, vector<4x32xf32>, vector<16x32xf32> -> vector<16x32xf32>
    %139 = arith.mulf %138, %123 : vector<16x32xf32>
    %140 = arith.mulf %134, %136 : vector<16x4xf32>
    %cst_67 = arith.constant dense<0.000000e+00> : vector<16x32xf32>
    %141 = tpu.matmul %140, %6, %cst_67 {dimension_numbers = #tpu.dot_dimension_numbers<[1], [0], [0], [1], [0, 0, 1, 1], [], []>} : vector<16x4xf32>, vector<4x32xf32>, vector<16x32xf32> -> vector<16x32xf32>
    %142 = arith.mulf %141, %127 : vector<16x32xf32>
    %143 = arith.addf %139, %142 : vector<16x32xf32>
    %c1_68 = arith.constant 1 : index
    %c0_69 = arith.constant 0 : index
    %c128_70 = arith.constant 128 : index
    %144 = vector.load %arg3[%c1_68, %c0_69, %c128_70] : memref<2x64x512xf32, #tpu.memory_space<vmem>>, vector<1x32x32xf32>
    %145 = vector.shape_cast %144 : vector<1x32x32xf32> to vector<32x32xf32>
    %cst_71 = arith.constant dense<0.000000e+00> : vector<16x32xf32>
    %146 = tpu.matmul %143, %145, %cst_71 {dimension_numbers = #tpu.dot_dimension_numbers<[1], [0], [0], [1], [0, 0, 1, 1], [], []>} : vector<16x32xf32>, vector<32x32xf32>, vector<16x32xf32> -> vector<16x32xf32>
    %c1_72 = arith.constant 1 : index
    %c0_73 = arith.constant 0 : index
    %c128_74 = arith.constant 128 : index
    %147 = vector.load %arg4[%c1_72, %c0_73, %c128_74] : memref<2x1x1024xf32, #tpu.memory_space<vmem>>, vector<1x1x32xf32>
    %148 = vector.shape_cast %147 : vector<1x1x32xf32> to vector<1x32xf32>
    %149 = vector.broadcast %148 : vector<1x32xf32> to vector<16x32xf32>
    %150 = arith.addf %146, %149 : vector<16x32xf32>
    %151 = arith.addf %113, %150 : vector<16x32xf32>
    %c1_75 = arith.constant 1 : index
    %c0_76 = arith.constant 0 : index
    %c256_77 = arith.constant 256 : index
    %152 = vector.load %arg4[%c1_75, %c0_76, %c256_77] : memref<2x1x1024xf32, #tpu.memory_space<vmem>>, vector<1x1x32xf32>
    %153 = vector.shape_cast %152 : vector<1x1x32xf32> to vector<1x32xf32>
    %c1_78 = arith.constant 1 : index
    %c0_79 = arith.constant 0 : index
    %c384_80 = arith.constant 384 : index
    %154 = vector.load %arg4[%c1_78, %c0_79, %c384_80] : memref<2x1x1024xf32, #tpu.memory_space<vmem>>, vector<1x1x32xf32>
    %155 = vector.shape_cast %154 : vector<1x1x32xf32> to vector<1x32xf32>
    %cst_81 = arith.constant dense<0.000000e+00> : vector<16xf32>
    %156 = vector.multi_reduction <add>, %151, %cst_81 [1] : vector<16x32xf32> to vector<16xf32>
    %157 = vector.shape_cast %156 : vector<16xf32> to vector<16x1xf32>
    %cst_82 = arith.constant 3.200000e+01 : f32
    %158 = vector.broadcast %cst_82 : f32 to vector<16x1xf32>
    %159 = arith.divf %157, %158 : vector<16x1xf32>
    %160 = vector.broadcast %159 : vector<16x1xf32> to vector<16x32xf32>
    %161 = arith.subf %151, %160 : vector<16x32xf32>
    %162 = arith.mulf %161, %161 : vector<16x32xf32>
    %cst_83 = arith.constant dense<0.000000e+00> : vector<16xf32>
    %163 = vector.multi_reduction <add>, %162, %cst_83 [1] : vector<16x32xf32> to vector<16xf32>
    %164 = vector.shape_cast %163 : vector<16xf32> to vector<16x1xf32>
    %cst_84 = arith.constant 3.200000e+01 : f32
    %165 = vector.broadcast %cst_84 : f32 to vector<16x1xf32>
    %166 = arith.divf %164, %165 : vector<16x1xf32>
    %167 = vector.broadcast %159 : vector<16x1xf32> to vector<16x32xf32>
    %168 = arith.subf %151, %167 : vector<16x32xf32>
    %cst_85 = arith.constant 9.99999974E-6 : f32
    %169 = vector.broadcast %cst_85 : f32 to vector<16x1xf32>
    %170 = arith.addf %166, %169 : vector<16x1xf32>
    %171 = math.rsqrt %170 : vector<16x1xf32>
    %172 = vector.broadcast %171 : vector<16x1xf32> to vector<16x32xf32>
    %173 = arith.mulf %168, %172 : vector<16x32xf32>
    %174 = vector.broadcast %153 : vector<1x32xf32> to vector<16x32xf32>
    %175 = arith.mulf %173, %174 : vector<16x32xf32>
    %176 = vector.broadcast %155 : vector<1x32xf32> to vector<16x32xf32>
    %177 = arith.addf %175, %176 : vector<16x32xf32>
    %c1_86 = arith.constant 1 : index
    %c0_87 = arith.constant 0 : index
    %c256_88 = arith.constant 256 : index
    %178 = vector.load %arg3[%c1_86, %c0_87, %c256_88] : memref<2x64x512xf32, #tpu.memory_space<vmem>>, vector<1x32x64xf32>
    %179 = vector.shape_cast %178 : vector<1x32x64xf32> to vector<32x64xf32>
    %cst_89 = arith.constant dense<0.000000e+00> : vector<16x64xf32>
    %180 = tpu.matmul %177, %179, %cst_89 {dimension_numbers = #tpu.dot_dimension_numbers<[1], [0], [0], [1], [0, 0, 1, 1], [], []>} : vector<16x32xf32>, vector<32x64xf32>, vector<16x64xf32> -> vector<16x64xf32>
    %c1_90 = arith.constant 1 : index
    %c0_91 = arith.constant 0 : index
    %c512_92 = arith.constant 512 : index
    %181 = vector.load %arg4[%c1_90, %c0_91, %c512_92] : memref<2x1x1024xf32, #tpu.memory_space<vmem>>, vector<1x1x64xf32>
    %182 = vector.shape_cast %181 : vector<1x1x64xf32> to vector<1x64xf32>
    %183 = vector.broadcast %182 : vector<1x64xf32> to vector<16x64xf32>
    %184 = arith.addf %180, %183 : vector<16x64xf32>
    %cst_93 = arith.constant 0.000000e+00 : f32
    %185 = vector.broadcast %cst_93 : f32 to vector<16x64xf32>
    %186 = arith.maximumf %184, %185 : vector<16x64xf32>
    %c1_94 = arith.constant 1 : index
    %c0_95 = arith.constant 0 : index
    %c384_96 = arith.constant 384 : index
    %187 = vector.load %arg3[%c1_94, %c0_95, %c384_96] : memref<2x64x512xf32, #tpu.memory_space<vmem>>, vector<1x64x32xf32>
    %188 = vector.shape_cast %187 : vector<1x64x32xf32> to vector<64x32xf32>
    %cst_97 = arith.constant dense<0.000000e+00> : vector<16x32xf32>
    %189 = tpu.matmul %186, %188, %cst_97 {dimension_numbers = #tpu.dot_dimension_numbers<[1], [0], [0], [1], [0, 0, 1, 1], [], []>} : vector<16x64xf32>, vector<64x32xf32>, vector<16x32xf32> -> vector<16x32xf32>
    %c1_98 = arith.constant 1 : index
    %c0_99 = arith.constant 0 : index
    %c640_100 = arith.constant 640 : index
    %190 = vector.load %arg4[%c1_98, %c0_99, %c640_100] : memref<2x1x1024xf32, #tpu.memory_space<vmem>>, vector<1x1x32xf32>
    %191 = vector.shape_cast %190 : vector<1x1x32xf32> to vector<1x32xf32>
    %192 = vector.broadcast %191 : vector<1x32xf32> to vector<16x32xf32>
    %193 = arith.addf %189, %192 : vector<16x32xf32>
    %194 = arith.addf %177, %193 : vector<16x32xf32>
    %c1_101 = arith.constant 1 : index
    %c0_102 = arith.constant 0 : index
    %c768_103 = arith.constant 768 : index
    %195 = vector.load %arg4[%c1_101, %c0_102, %c768_103] : memref<2x1x1024xf32, #tpu.memory_space<vmem>>, vector<1x1x32xf32>
    %196 = vector.shape_cast %195 : vector<1x1x32xf32> to vector<1x32xf32>
    %c1_104 = arith.constant 1 : index
    %c0_105 = arith.constant 0 : index
    %c896_106 = arith.constant 896 : index
    %197 = vector.load %arg4[%c1_104, %c0_105, %c896_106] : memref<2x1x1024xf32, #tpu.memory_space<vmem>>, vector<1x1x32xf32>
    %198 = vector.shape_cast %197 : vector<1x1x32xf32> to vector<1x32xf32>
    %cst_107 = arith.constant dense<0.000000e+00> : vector<16xf32>
    %199 = vector.multi_reduction <add>, %194, %cst_107 [1] : vector<16x32xf32> to vector<16xf32>
    %200 = vector.shape_cast %199 : vector<16xf32> to vector<16x1xf32>
    %cst_108 = arith.constant 3.200000e+01 : f32
    %201 = vector.broadcast %cst_108 : f32 to vector<16x1xf32>
    %202 = arith.divf %200, %201 : vector<16x1xf32>
    %203 = vector.broadcast %202 : vector<16x1xf32> to vector<16x32xf32>
    %204 = arith.subf %194, %203 : vector<16x32xf32>
    %205 = arith.mulf %204, %204 : vector<16x32xf32>
    %cst_109 = arith.constant dense<0.000000e+00> : vector<16xf32>
    %206 = vector.multi_reduction <add>, %205, %cst_109 [1] : vector<16x32xf32> to vector<16xf32>
    %207 = vector.shape_cast %206 : vector<16xf32> to vector<16x1xf32>
    %cst_110 = arith.constant 3.200000e+01 : f32
    %208 = vector.broadcast %cst_110 : f32 to vector<16x1xf32>
    %209 = arith.divf %207, %208 : vector<16x1xf32>
    %210 = vector.broadcast %202 : vector<16x1xf32> to vector<16x32xf32>
    %211 = arith.subf %194, %210 : vector<16x32xf32>
    %cst_111 = arith.constant 9.99999974E-6 : f32
    %212 = vector.broadcast %cst_111 : f32 to vector<16x1xf32>
    %213 = arith.addf %209, %212 : vector<16x1xf32>
    %214 = math.rsqrt %213 : vector<16x1xf32>
    %215 = vector.broadcast %214 : vector<16x1xf32> to vector<16x32xf32>
    %216 = arith.mulf %211, %215 : vector<16x32xf32>
    %217 = vector.broadcast %196 : vector<1x32xf32> to vector<16x32xf32>
    %218 = arith.mulf %216, %217 : vector<16x32xf32>
    %219 = vector.broadcast %198 : vector<1x32xf32> to vector<16x32xf32>
    %220 = arith.addf %218, %219 : vector<16x32xf32>
    %c40 = arith.constant 40 : index
    %c0_112 = arith.constant 0 : index
    %221 = vector.load %arg5[%c40, %c0_112] : memref<88x128xf32, #tpu.memory_space<vmem>>, vector<2x16xf32>
    %cst_113 = arith.constant dense<0.000000e+00> : vector<2x32xf32>
    %222 = tpu.matmul %221, %220, %cst_113 {dimension_numbers = #tpu.dot_dimension_numbers<[1], [0], [0], [1], [0, 0, 1, 1], [], []>} : vector<2x16xf32>, vector<16x32xf32>, vector<2x32xf32> -> vector<2x32xf32>
    %c48 = arith.constant 48 : index
    %c0_114 = arith.constant 0 : index
    %223 = vector.load %arg5[%c48, %c0_114] : memref<88x128xf32, #tpu.memory_space<vmem>>, vector<32x128xf32>
    %cst_115 = arith.constant dense<0.000000e+00> : vector<2x128xf32>
    %224 = tpu.matmul %222, %223, %cst_115 {dimension_numbers = #tpu.dot_dimension_numbers<[1], [0], [0], [1], [0, 0, 1, 1], [], []>} : vector<2x32xf32>, vector<32x128xf32>, vector<2x128xf32> -> vector<2x128xf32>
    %c80 = arith.constant 80 : index
    %c0_116 = arith.constant 0 : index
    %225 = vector.load %arg5[%c80, %c0_116] : memref<88x128xf32, #tpu.memory_space<vmem>>, vector<1x128xf32>
    %226 = vector.broadcast %225 : vector<1x128xf32> to vector<2x128xf32>
    %227 = arith.addf %224, %226 : vector<2x128xf32>
    %c0_117 = arith.constant 0 : index
    %c0_118 = arith.constant 0 : index
    %228 = vector.load %arg6[%c0_117, %c0_118] : memref<2x128xf32, #tpu.memory_space<vmem>>, vector<2x128xf32>
    tpu.vector_store %arg6[%c0_117, %c0_118], %227 {strides = array<i32>} : memref<2x128xf32, #tpu.memory_space<vmem>>, vector<2x128xf32>,
    return
  }
  func.func @transform_0(%arg0: i32) -> (i32, i32) {
    %c0_i32 = arith.constant 0 : i32
    %c0_i32_0 = arith.constant 0 : i32
    %c0_i32_1 = arith.constant 0 : i32
    return %c0_i32, %c0_i32_0 : i32, i32
  }
  func.func @transform_1(%arg0: i32) -> (i32, i32) {
    %c0_i32 = arith.constant 0 : i32
    %c0_i32_0 = arith.constant 0 : i32
    %c0_i32_1 = arith.constant 0 : i32
    return %c0_i32, %c0_i32_0 : i32, i32
  }
  func.func @transform_2(%arg0: i32) -> (i32, i32, i32) {
    %c0_i32 = arith.constant 0 : i32
    %c0_i32_0 = arith.constant 0 : i32
    %c0_i32_1 = arith.constant 0 : i32
    %c0_i32_2 = arith.constant 0 : i32
    return %c0_i32, %c0_i32_0, %c0_i32_1 : i32, i32, i32
  }
  func.func @transform_3(%arg0: i32) -> (i32, i32, i32) {
    %c0_i32 = arith.constant 0 : i32
    %c0_i32_0 = arith.constant 0 : i32
    %c0_i32_1 = arith.constant 0 : i32
    %c0_i32_2 = arith.constant 0 : i32
    return %c0_i32, %c0_i32_0, %c0_i32_1 : i32, i32, i32
  }
  func.func @transform_4(%arg0: i32) -> (i32, i32) {
    %c0_i32 = arith.constant 0 : i32
    %c0_i32_0 = arith.constant 0 : i32
    %c0_i32_1 = arith.constant 0 : i32
    return %c0_i32, %c0_i32_0 : i32, i32
  }
  func.func @transform_5(%arg0: i32) -> (i32, i32) {
    %c0_i32 = arith.constant 0 : i32
    %c0_i32_0 = arith.constant 0 : i32
    %c0_i32_1 = arith.constant 0 : i32
    return %c0_i32, %c0_i32_0 : i32, i32
  }
}

</mosaic_0001>

<llo_original>
// kernel: forward.1
$region0: #{forward.1}
  #allocation0 [shape = 'u32[]', space=smem, size = 0x4, offset = 0x4, fixed_abs, tag = 'smem constant byte address 0x4 - core index']
  #allocation1 [shape = 'u32[144,128]{1,0:T(1,128)}', space=vmem, size = 0x12000, scoped, tag = 'internal scratch']
  %s0 = inlined_call_operand.hbm [shape: f32[16,16], index: 0, kind: input, shape index: {}]
  %s1 = inlined_call_operand.hbm [shape: f32[32,32], index: 1, kind: input, shape index: {}]
  %s2 = inlined_call_operand.hbm [shape: f32[2,64,512], index: 2, kind: input, shape index: {}]
  %s3 = inlined_call_operand.hbm [shape: f32[2,1,1024], index: 3, kind: input, shape index: {}]
  %s4 = inlined_call_operand.hbm [shape: f32[88,128], index: 4, kind: input, shape index: {}]
  %s5 = inlined_call_operand.vmem [shape: f32[2,128], index: 5, kind: output, shape index: {}]
  %s6 = sld [smem:[#allocation0]]
  $region50: #{forward.1} parent=0
    _
  %s8 = ssub.s32 1, %s6
  %s9 = scalar_select 0, %s8, %s6
  $region1: #{forward.1} parent=0
    #allocation2 [shape = 'u8[8192]{0}', space=vmem, size = 0x2000, scoped, tag = 'input window, operand 0, single buffered']
    #allocation3 [shape = 's32[1]{0}', space=sflag, size = 0x4, scoped, tag = 'scoped memory for forward.1']
    #allocation4 [shape = 'u8[16384]{0}', space=vmem, size = 0x4000, scoped, tag = 'input window, operand 1, single buffered']
    #allocation5 [shape = 's32[1]{0}', space=sflag, size = 0x4, scoped, tag = 'scoped memory for forward.1']
    #allocation6 [shape = 'u8[262144]{0}', space=vmem, size = 0x40000, scoped, tag = 'input window, operand 2, single buffered']
    #allocation7 [shape = 'u8[8192]{0}', space=vmem, size = 0x2000, scoped, tag = 'input window, operand 3, single buffered']
    #allocation8 [shape = 's32[1]{0}', space=sflag, size = 0x4, scoped, tag = 'scoped memory for forward.1']
    #allocation9 [shape = 'u8[45056]{0}', space=vmem, size = 0xb000, scoped, tag = 'input window, operand 4, single buffered']
    %10 = vsyncpa [#allocation3], 0
    %11 = vsyncpa [#allocation5], 0
    %12 = vsyncpa [#allocation8], 0
    // Predicated region
    $region2: #{forward.1} parent=1 // pred_check
      _
    $region3: #{forward.1} parent=1 // pred_check_branch
      %14 = sbr.rel (0) target = $region5
    $region4: #{forward.1} parent=1 // pred_region
      %s16 = ssub.s32 256, 256
      %17 = vsyncadd [#allocation3], %s16
      %s18 = sshll.u32 [#allocation2], 4
      %s19 = int_to_ptr.vmem [resolvable:$true] %s18
      %24 = dma.hbm_to_vmem [thread:$0]  %s0, 256, %s19, [#allocation3], 128, 128, 8
    $region5: #{forward.1} parent=1 // pred_fallthru
      _
    // Predicated region
    $region6: #{forward.1} parent=1 // pred_check
      _
    $region7: #{forward.1} parent=1 // pred_check_branch
      %26 = sbr.rel (0) target = $region9
    $region8: #{forward.1} parent=1 // pred_region
      %s28 = ssub.s32 512, 512
      %29 = vsyncadd [#allocation5], %s28
      %s30 = sshll.u32 [#allocation4], 4
      %s31 = int_to_ptr.vmem [resolvable:$true] %s30
      %36 = dma.hbm_to_vmem [thread:$0]  %s1, 512, %s31, [#allocation5], 128, 128, 8
    $region9: #{forward.1} parent=1 // pred_fallthru
      _
    // Predicated region
    $region10: #{forward.1} parent=1 // pred_check
      _
    $region11: #{forward.1} parent=1 // pred_check_branch
      %38 = sbr.rel (0) target = $region13
    $region12: #{forward.1} parent=1 // pred_region
      %s40 = ssub.s32 8192, 8192
      %41 = vsyncadd [#allocation5], %s40
      %s42 = sshll.u32 [#allocation6], 4
      %s43 = int_to_ptr.vmem [resolvable:$true] %s42
      %48 = dma.hbm_to_vmem [thread:$0]  %s2, 8192, %s43, [#allocation5], 512, 512, 32
    $region13: #{forward.1} parent=1 // pred_fallthru
      _
    // Predicated region
    $region14: #{forward.1} parent=1 // pred_check
      _
    $region15: #{forward.1} parent=1 // pred_check_branch
      %50 = sbr.rel (0) target = $region17
    $region16: #{forward.1} parent=1 // pred_region
      %s52 = ssub.s32 256, 256
      %53 = vsyncadd [#allocation8], %s52
      %s54 = sshll.u32 [#allocation7], 4
      %s55 = int_to_ptr.vmem [resolvable:$true] %s54
      %60 = dma.hbm_to_vmem [thread:$0]  %s3, 256, %s55, [#allocation8], 128, 128, 8
    $region17: #{forward.1} parent=1 // pred_fallthru
      _
    // Predicated region
    $region18: #{forward.1} parent=1 // pred_check
      _
    $region19: #{forward.1} parent=1 // pred_check_branch
      %62 = sbr.rel (0) target = $region21
    $region20: #{forward.1} parent=1 // pred_region
      %s64 = ssub.s32 1408, 1408
      %65 = vsyncadd [#allocation8], %s64
      %s66 = sshll.u32 [#allocation9], 4
      %s67 = int_to_ptr.vmem [resolvable:$true] %s66
      %72 = dma.hbm_to_vmem [thread:$0]  %s4, 1408, %s67, [#allocation8], 128, 128, 8
    $region21: #{forward.1} parent=1 // pred_fallthru
      _
    // Predicated region
    $region22: #{forward.1} parent=1 // pred_check
      _
    $region23: #{forward.1} parent=1 // pred_check_branch
      %74 = sbr.rel (0) target = $region25
    $region24: #{forward.1} parent=1 // pred_region
      %75 = dma.done [#allocation3], 256
    $region25: #{forward.1} parent=1 // pred_fallthru
      _
    // Predicated region
    $region26: #{forward.1} parent=1 // pred_check
      _
    $region27: #{forward.1} parent=1 // pred_check_branch
      %77 = sbr.rel (0) target = $region29
    $region28: #{forward.1} parent=1 // pred_region
      %78 = dma.done [#allocation5], 512
    $region29: #{forward.1} parent=1 // pred_fallthru
      _
    // Predicated region
    $region30: #{forward.1} parent=1 // pred_check
      _
    $region31: #{forward.1} parent=1 // pred_check_branch
      %80 = sbr.rel (0) target = $region33
    $region32: #{forward.1} parent=1 // pred_region
      %81 = dma.done [#allocation5], 8192
    $region33: #{forward.1} parent=1 // pred_fallthru
      _
    // Predicated region
    $region34: #{forward.1} parent=1 // pred_check
      _
    $region35: #{forward.1} parent=1 // pred_check_branch
      %83 = sbr.rel (0) target = $region37
    $region36: #{forward.1} parent=1 // pred_region
      %84 = dma.done [#allocation8], 256
    $region37: #{forward.1} parent=1 // pred_fallthru
      _
    // Predicated region
    $region38: #{forward.1} parent=1 // pred_check
      _
    $region39: #{forward.1} parent=1 // pred_check_branch
      %86 = sbr.rel (0) target = $region41
    $region40: #{forward.1} parent=1 // pred_region
      %87 = dma.done [#allocation8], 1408
    $region41: #{forward.1} parent=1 // pred_fallthru
      _
    %v88 = vld [vmem:[#allocation2] sm:$0xff]
    %v89 = vld [vmem:[#allocation2 + $0x8] sm:$0xff]
    %v90 = vld [vmem:[#allocation4] sm:$0xff]
    %v91 = vld [vmem:[#allocation4 + $0x8] sm:$0xff]
    %v92 = vld [vmem:[#allocation4 + $0x10] sm:$0xff]
    %v93 = vld [vmem:[#allocation4 + $0x18] sm:$0xff]
    %vm94 = vcmask 130048
    %v96 = vsel %vm94, %v88, 0
    %v99 = vsel %vm94, %v89, 0
    %101 = vmatprep.subr.mxu0 0.0
    %102 = vmatpush1.msra.mxu0 0.0
    %103 = vmatprep.subr.mxu0 0.0
    %104 = vmatpush1.msra.mxu0 0.0
    %105 = vmatprep.subr.mxu0 0.0
    %106 = vmatpush1.msra.mxu0 0.0
    %107 = vmatprep.subr.mxu0 0.0
    %108 = vmatpush1.msra.mxu0 0.0
    %109 = vmatprep.subr.mxu0 0.0
    %110 = vmatpush1.msra.mxu0 0.0
    %111 = vmatprep.subr.mxu0 0.0
    %112 = vmatpush1.msra.mxu0 0.0
    %113 = vmatprep.subr.mxu0 0.0
    %114 = vmatpush1.msra.mxu0 0.0
    %115 = vmatprep.subr.mxu0 0.0
    %116 = vmatpush1.msra.mxu0 0.0
    %117 = vmatprep.subr.mxu0 0.0
    %118 = vmatpush1.msra.mxu0 0.0
    %119 = vmatprep.subr.mxu0 0.0
    %120 = vmatpush1.msra.mxu0 0.0
    %121 = vmatprep.subr.mxu0 0.0
    %122 = vmatpush1.msra.mxu0 0.0
    %123 = vmatprep.subr.mxu0 0.0
    %124 = vmatpush1.msra.mxu0 0.0
    %125 = vmatprep.subr.mxu0 0.0
    %126 = vmatpush1.msra.mxu0 0.0
    %127 = vmatprep.subr.mxu0 0.0
    %128 = vmatpush1.msra.mxu0 0.0
    %129 = vmatprep.subr.mxu0 0.0
    %130 = vmatpush1.msra.mxu0 %v91
    %131 = vmatprep.subr.mxu0 0.0
    %132 = vmatpush1.msra.mxu0 %v90
    %133 = vmatprep.subr.mxu0 0.0
    %134 = vmatpush2.msra.mxu0 0.0
    %135 = vmatprep.subr.mxu0 0.0
    %136 = vmatpush2.msra.mxu0 0.0
    %137 = vmatprep.subr.mxu0 0.0
    %138 = vmatpush2.msra.mxu0 0.0
    %139 = vmatprep.subr.mxu0 0.0
    %140 = vmatpush2.msra.mxu0 0.0
    %141 = vmatprep.subr.mxu0 0.0
    %142 = vmatpush2.msra.mxu0 0.0
    %143 = vmatprep.subr.mxu0 0.0
    %144 = vmatpush2.msra.mxu0 0.0
    %145 = vmatprep.subr.mxu0 0.0
    %146 = vmatpush2.msra.mxu0 0.0
    %147 = vmatprep.subr.mxu0 0.0
    %148 = vmatpush2.msra.mxu0 0.0
    %149 = vmatprep.subr.mxu0 0.0
    %150 = vmatpush2.msra.mxu0 0.0
    %151 = vmatprep.subr.mxu0 0.0
    %152 = vmatpush2.msra.mxu0 0.0
    %153 = vmatprep.subr.mxu0 0.0
    %154 = vmatpush2.msra.mxu0 0.0
    %155 = vmatprep.subr.mxu0 0.0
    %156 = vmatpush2.msra.mxu0 0.0
    %157 = vmatprep.subr.mxu0 0.0
    %158 = vmatpush2.msra.mxu0 0.0
    %159 = vmatprep.subr.mxu0 0.0
    %160 = vmatpush2.msra.mxu0 0.0
    %161 = vmatprep.subr.mxu0 0.0
    %162 = vmatpush2.msra.mxu0 0.0
    %163 = vmatprep.subr.mxu0 0.0
    %164 = vmatpush2.msra.mxu0 0.0
    %165 = vmatprep.mubr.f32.mxu0 0.0
    %166 = vmatmul.mubr.f32.gmra.mxu0 %v96
    %v167 = vpop.f32.mrf.mxu0
    %v168 = vadd.f32 %v92, %v167
    %v169 = vpop.f32.mrf.mxu0
    %170 = vmatprep.mubr.f32.mxu0 0.0
    %171 = vmatmul.mubr.f32.gmra.mxu0 %v99
    %v172 = vpop.f32.mrf.mxu0
    %v173 = vadd.f32 %v93, %v172
    %v174 = vpop.f32.mrf.mxu0
    %175 = vdwg.mxu0
    %v176 = vld [vmem:[#allocation9] sm:$0xff]
    %v177 = vld [vmem:[#allocation9 + $0x8] sm:$0xff]
    %v178 = vld [vmem:[#allocation9 + $0x10] sm:$0xff]
    %v179 = vld [vmem:[#allocation9 + $0x18] sm:$0xff]
    %v180 = vld [vmem:[#allocation9 + $0x20] sm:$0xf]
    %v181 = vld [vmem:[#allocation6] sm:$0xff]
    %v182 = vld [vmem:[#allocation6 + $0x20] sm:$0xff]
    %v183 = vld [vmem:[#allocation6 + $0x40] sm:$0xff]
    %v184 = vld [vmem:[#allocation6 + $0x60] sm:$0xff]
    %v185 = vld [vmem:[#allocation7] sm:$0x1]
    %v187 = vlaneseq
    %v188 = vshrl.u32 %v187, 7
    %v189 = vsub.s32 0, %v188
    %v190 = vrot.slane %v185, %v189
    %vm192 = vcmask 261120
    %v194 = vsel %vm192, %v168, 0
    %v197 = vsel %vm192, %v173, 0
    %199 = vmatprep.subr.mxu0 0.0
    %200 = vmatpush1.msra.mxu0 0.0
    %201 = vmatprep.subr.mxu0 0.0
    %202 = vmatpush1.msra.mxu0 0.0
    %203 = vmatprep.subr.mxu0 0.0
    %204 = vmatpush1.msra.mxu0 0.0
    %205 = vmatprep.subr.mxu0 0.0
    %206 = vmatpush1.msra.mxu0 0.0
    %207 = vmatprep.subr.mxu0 0.0
    %208 = vmatpush1.msra.mxu0 0.0
    %209 = vmatprep.subr.mxu0 0.0
    %210 = vmatpush1.msra.mxu0 0.0
    %211 = vmatprep.subr.mxu0 0.0
    %212 = vmatpush1.msra.mxu0 0.0
    %213 = vmatprep.subr.mxu0 0.0
    %214 = vmatpush1.msra.mxu0 0.0
    %215 = vmatprep.subr.mxu0 0.0
    %216 = vmatpush1.msra.mxu0 0.0
    %217 = vmatprep.subr.mxu0 0.0
    %218 = vmatpush1.msra.mxu0 0.0
    %219 = vmatprep.subr.mxu0 0.0
    %220 = vmatpush1.msra.mxu0 0.0
    %221 = vmatprep.subr.mxu0 0.0
    %222 = vmatpush1.msra.mxu0 0.0
    %223 = vmatprep.subr.mxu0 0.0
    %224 = vmatpush1.msra.mxu0 %v184
    %225 = vmatprep.subr.mxu0 0.0
    %226 = vmatpush1.msra.mxu0 %v183
    %227 = vmatprep.subr.mxu0 0.0
    %228 = vmatpush1.msra.mxu0 %v182
    %229 = vmatprep.subr.mxu0 0.0
    %230 = vmatpush1.msra.mxu0 %v181
    %231 = vmatprep.subr.mxu0 0.0
    %232 = vmatpush2.msra.mxu0 0.0
    %233 = vmatprep.subr.mxu0 0.0
    %234 = vmatpush2.msra.mxu0 0.0
    %235 = vmatprep.subr.mxu0 0.0
    %236 = vmatpush2.msra.mxu0 0.0
    %237 = vmatprep.subr.mxu0 0.0
    %238 = vmatpush2.msra.mxu0 0.0
    %239 = vmatprep.subr.mxu0 0.0
    %240 = vmatpush2.msra.mxu0 0.0
    %241 = vmatprep.subr.mxu0 0.0
    %242 = vmatpush2.msra.mxu0 0.0
    %243 = vmatprep.subr.mxu0 0.0
    %244 = vmatpush2.msra.mxu0 0.0
    %245 = vmatprep.subr.mxu0 0.0
    %246 = vmatpush2.msra.mxu0 0.0
    %247 = vmatprep.subr.mxu0 0.0
    %248 = vmatpush2.msra.mxu0 0.0
    %249 = vmatprep.subr.mxu0 0.0
    %250 = vmatpush2.msra.mxu0 0.0
    %251 = vmatprep.subr.mxu0 0.0
    %252 = vmatpush2.msra.mxu0 0.0
    %253 = vmatprep.subr.mxu0 0.0
    %254 = vmatpush2.msra.mxu0 0.0
    %255 = vmatprep.subr.mxu0 0.0
    %256 = vmatpush2.msra.mxu0 0.0
    %257 = vmatprep.subr.mxu0 0.0
    %258 = vmatpush2.msra.mxu0 0.0
    %259 = vmatprep.subr.mxu0 0.0
    %260 = vmatpush2.msra.mxu0 0.0
    %261 = vmatprep.subr.mxu0 0.0
    %262 = vmatpush2.msra.mxu0 0.0
    %263 = vmatprep.mubr.f32.mxu0 0.0
    %264 = vmatmul.mubr.f32.gmra.mxu0 %v194
    %v265 = vpop.f32.mrf.mxu0
    %v266 = vadd.f32 %v190, %v265
    %v267 = vpop.f32.mrf.mxu0
    %268 = vmatprep.mubr.f32.mxu0 0.0
    %269 = vmatmul.mubr.f32.gmra.mxu0 %v197
    %v270 = vpop.f32.mrf.mxu0
    %v271 = vadd.f32 %v190, %v270
    %v272 = vpop.f32.mrf.mxu0
    %273 = vdwg.mxu0
    %276 = vrot.lane.b32.xlu0 %v266, 96
    %v277 = vpop.permute.xlu0 %276
    %278 = vrot.lane.b32.xlu0 %v271, 96
    %v279 = vpop.permute.xlu0 %278
    %v282 = vmul.f32 %v266, %v277
    %v283 = vmul.f32 %v271, %v279
    %v285 = vsel %vm192, %v282, 0
    %v288 = vsel %vm192, %v283, 0
    %290 = vmatprep.subr.mxu0 0.0
    %291 = vmatpush1.msra.mxu0 0.0
    %292 = vmatprep.subr.mxu0 0.0
    %293 = vmatpush1.msra.mxu0 0.0
    %294 = vmatprep.subr.mxu0 0.0
    %295 = vmatpush1.msra.mxu0 0.0
    %296 = vmatprep.subr.mxu0 0.0
    %297 = vmatpush1.msra.mxu0 0.0
    %298 = vmatprep.subr.mxu0 0.0
    %299 = vmatpush1.msra.mxu0 0.0
    %300 = vmatprep.subr.mxu0 0.0
    %301 = vmatpush1.msra.mxu0 0.0
    %302 = vmatprep.subr.mxu0 0.0
    %303 = vmatpush1.msra.mxu0 0.0
    %304 = vmatprep.subr.mxu0 0.0
    %305 = vmatpush1.msra.mxu0 0.0
    %306 = vmatprep.subr.mxu0 0.0
    %307 = vmatpush1.msra.mxu0 0.0
    %308 = vmatprep.subr.mxu0 0.0
    %309 = vmatpush1.msra.mxu0 0.0
    %310 = vmatprep.subr.mxu0 0.0
    %311 = vmatpush1.msra.mxu0 0.0
    %312 = vmatprep.subr.mxu0 0.0
    %313 = vmatpush1.msra.mxu0 0.0
    %314 = vmatprep.subr.mxu0 0.0
    %315 = vmatpush1.msra.mxu0 %v179
    %316 = vmatprep.subr.mxu0 0.0
    %317 = vmatpush1.msra.mxu0 %v178
    %318 = vmatprep.subr.mxu0 0.0
    %319 = vmatpush1.msra.mxu0 %v177
    %320 = vmatprep.subr.mxu0 0.0
    %321 = vmatpush1.msra.mxu0 %v176
    %322 = vmatprep.subr.mxu0 0.0
    %323 = vmatpush2.msra.mxu0 0.0
    %324 = vmatprep.subr.mxu0 0.0
    %325 = vmatpush2.msra.mxu0 0.0
    %326 = vmatprep.subr.mxu0 0.0
    %327 = vmatpush2.msra.mxu0 0.0
    %328 = vmatprep.subr.mxu0 0.0
    %329 = vmatpush2.msra.mxu0 0.0
    %330 = vmatprep.subr.mxu0 0.0
    %331 = vmatpush2.msra.mxu0 0.0
    %332 = vmatprep.subr.mxu0 0.0
    %333 = vmatpush2.msra.mxu0 0.0
    %334 = vmatprep.subr.mxu0 0.0
    %335 = vmatpush2.msra.mxu0 0.0
    %336 = vmatprep.subr.mxu0 0.0
    %337 = vmatpush2.msra.mxu0 0.0
    %338 = vmatprep.subr.mxu0 0.0
    %339 = vmatpush2.msra.mxu0 0.0
    %340 = vmatprep.subr.mxu0 0.0
    %341 = vmatpush2.msra.mxu0 0.0
    %342 = vmatprep.subr.mxu0 0.0
    %343 = vmatpush2.msra.mxu0 0.0
    %344 = vmatprep.subr.mxu0 0.0
    %345 = vmatpush2.msra.mxu0 0.0
    %346 = vmatprep.subr.mxu0 0.0
    %347 = vmatpush2.msra.mxu0 0.0
    %348 = vmatprep.subr.mxu0 0.0
    %349 = vmatpush2.msra.mxu0 0.0
    %350 = vmatprep.subr.mxu0 0.0
    %351 = vmatpush2.msra.mxu0 0.0
    %352 = vmatprep.subr.mxu0 0.0
    %353 = vmatpush2.msra.mxu0 0.0
    %354 = vmatprep.mubr.f32.mxu0 0.0
    %355 = vmatmul.mubr.f32.gmra.mxu0 %v285
    %v356 = vpop.f32.mrf.mxu0
    %v357 = vadd.f32 0.0, %v356
    %v358 = vpop.f32.mrf.mxu0
    %359 = vmatprep.mubr.f32.mxu0 0.0
    %360 = vmatmul.mubr.f32.gmra.mxu0 %v288
    %v361 = vpop.f32.mrf.mxu0
    %v362 = vadd.f32 0.0, %v361
    %v363 = vpop.f32.mrf.mxu0
    %364 = vdwg.mxu0
    %365 = vrot.lane.b32.xlu0 %v266, 64
    %v366 = vpop.permute.xlu0 %365
    %367 = vrot.lane.b32.xlu0 %v271, 64
    %v368 = vpop.permute.xlu0 %367
    %v371 = vmul.f32 %v266, %v279
    %v372 = vmul.f32 %v271, %v277
    %v374 = vsel %vm192, %v371, 0
    %v377 = vsel %vm192, %v372, 0
    %379 = vmatprep.subr.mxu0 0.0
    %380 = vmatpush1.msra.mxu0 0.0
    %381 = vmatprep.subr.mxu0 0.0
    %382 = vmatpush1.msra.mxu0 0.0
    %383 = vmatprep.subr.mxu0 0.0
    %384 = vmatpush1.msra.mxu0 0.0
    %385 = vmatprep.subr.mxu0 0.0
    %386 = vmatpush1.msra.mxu0 0.0
    %387 = vmatprep.subr.mxu0 0.0
    %388 = vmatpush1.msra.mxu0 0.0
    %389 = vmatprep.subr.mxu0 0.0
    %390 = vmatpush1.msra.mxu0 0.0
    %391 = vmatprep.subr.mxu0 0.0
    %392 = vmatpush1.msra.mxu0 0.0
    %393 = vmatprep.subr.mxu0 0.0
    %394 = vmatpush1.msra.mxu0 0.0
    %395 = vmatprep.subr.mxu0 0.0
    %396 = vmatpush1.msra.mxu0 0.0
    %397 = vmatprep.subr.mxu0 0.0
    %398 = vmatpush1.msra.mxu0 0.0
    %399 = vmatprep.subr.mxu0 0.0
    %400 = vmatpush1.msra.mxu0 0.0
    %401 = vmatprep.subr.mxu0 0.0
    %402 = vmatpush1.msra.mxu0 0.0
    %403 = vmatprep.subr.mxu0 0.0
    %404 = vmatpush1.msra.mxu0 %v179
    %405 = vmatprep.subr.mxu0 0.0
    %406 = vmatpush1.msra.mxu0 %v178
    %407 = vmatprep.subr.mxu0 0.0
    %408 = vmatpush1.msra.mxu0 %v177
    %409 = vmatprep.subr.mxu0 0.0
    %410 = vmatpush1.msra.mxu0 %v176
    %411 = vmatprep.subr.mxu0 0.0
    %412 = vmatpush2.msra.mxu0 0.0
    %413 = vmatprep.subr.mxu0 0.0
    %414 = vmatpush2.msra.mxu0 0.0
    %415 = vmatprep.subr.mxu0 0.0
    %416 = vmatpush2.msra.mxu0 0.0
    %417 = vmatprep.subr.mxu0 0.0
    %418 = vmatpush2.msra.mxu0 0.0
    %419 = vmatprep.subr.mxu0 0.0
    %420 = vmatpush2.msra.mxu0 0.0
    %421 = vmatprep.subr.mxu0 0.0
    %422 = vmatpush2.msra.mxu0 0.0
    %423 = vmatprep.subr.mxu0 0.0
    %424 = vmatpush2.msra.mxu0 0.0
    %425 = vmatprep.subr.mxu0 0.0
    %426 = vmatpush2.msra.mxu0 0.0
    %427 = vmatprep.subr.mxu0 0.0
    %428 = vmatpush2.msra.mxu0 0.0
    %429 = vmatprep.subr.mxu0 0.0
    %430 = vmatpush2.msra.mxu0 0.0
    %431 = vmatprep.subr.mxu0 0.0
    %432 = vmatpush2.msra.mxu0 0.0
    %433 = vmatprep.subr.mxu0 0.0
    %434 = vmatpush2.msra.mxu0 0.0
    %435 = vmatprep.subr.mxu0 0.0
    %436 = vmatpush2.msra.mxu0 0.0
    %437 = vmatprep.subr.mxu0 0.0
    %438 = vmatpush2.msra.mxu0 0.0
    %439 = vmatprep.subr.mxu0 0.0
    %440 = vmatpush2.msra.mxu0 0.0
    %441 = vmatprep.subr.mxu0 0.0
    %442 = vmatpush2.msra.mxu0 0.0
    %443 = vmatprep.mubr.f32.mxu0 0.0
    %444 = vmatmul.mubr.f32.gmra.mxu0 %v374
    %v445 = vpop.f32.mrf.mxu0
    %v446 = vadd.f32 0.0, %v445
    %v447 = vpop.f32.mrf.mxu0
    %448 = vmatprep.mubr.f32.mxu0 0.0
    %449 = vmatmul.mubr.f32.gmra.mxu0 %v377
    %v450 = vpop.f32.mrf.mxu0
    %v451 = vadd.f32 0.0, %v450
    %v452 = vpop.f32.mrf.mxu0
    %453 = vdwg.mxu0
    %v454 = vmax.f32 %v357, %v446
    %v455 = vmax.f32 %v362, %v451
    %v456 = vsub.f32 %v357, %v454
    %v457 = vsub.f32 %v362, %v455
    %v458 = vmul.f32 %v456, 1.442695
    %v459 = vpow.pop %v458
    %v460 = vmul.f32 %v457, 1.442695
    %v461 = vpow.pop %v460
    %v462 = vsub.f32 %v446, %v454
    %v463 = vsub.f32 %v451, %v455
    %v464 = vmul.f32 %v462, 1.442695
    %v465 = vpow.pop %v464
    %v466 = vmul.f32 %v463, 1.442695
    %v467 = vpow.pop %v466
    %v468 = vadd.f32 %v459, %v465
    %v469 = vadd.f32 %v461, %v467
    %v470 = vrcp.pop %v468
    %v471 = vrcp.pop %v469
    %v472 = vmul.f32 %v459, %v470
    %v473 = vmul.f32 %v461, %v471
    %vm474 = vcmask 31744
    %v476 = vsel %vm474, %v472, 0
    %v479 = vsel %vm474, %v473, 0
    %vm481 = vcmask 1043456
    %v483 = vsel %vm481, %v180, 0
    %485 = vmatprep.subr.mxu0 0.0
    %486 = vmatpush1.msra.mxu0 0.0
    %487 = vmatprep.subr.mxu0 0.0
    %488 = vmatpush1.msra.mxu0 0.0
    %489 = vmatprep.subr.mxu0 0.0
    %490 = vmatpush1.msra.mxu0 0.0
    %491 = vmatprep.subr.mxu0 0.0
    %492 = vmatpush1.msra.mxu0 0.0
    %493 = vmatprep.subr.mxu0 0.0
    %494 = vmatpush1.msra.mxu0 0.0
    %495 = vmatprep.subr.mxu0 0.0
    %496 = vmatpush1.msra.mxu0 0.0
    %497 = vmatprep.subr.mxu0 0.0
    %498 = vmatpush1.msra.mxu0 0.0
    %499 = vmatprep.subr.mxu0 0.0
    %500 = vmatpush1.msra.mxu0 0.0
    %501 = vmatprep.subr.mxu0 0.0
    %502 = vmatpush1.msra.mxu0 0.0
    %503 = vmatprep.subr.mxu0 0.0
    %504 = vmatpush1.msra.mxu0 0.0
    %505 = vmatprep.subr.mxu0 0.0
    %506 = vmatpush1.msra.mxu0 0.0
    %507 = vmatprep.subr.mxu0 0.0
    %508 = vmatpush1.msra.mxu0 0.0
    %509 = vmatprep.subr.mxu0 0.0
    %510 = vmatpush1.msra.mxu0 0.0
    %511 = vmatprep.subr.mxu0 0.0
    %512 = vmatpush1.msra.mxu0 0.0
    %513 = vmatprep.subr.mxu0 0.0
    %514 = vmatpush1.msra.mxu0 0.0
    %515 = vmatprep.subr.mxu0 0.0
    %516 = vmatpush1.msra.mxu0 %v483
    %517 = vmatprep.subr.mxu0 0.0
    %518 = vmatpush2.msra.mxu0 0.0
    %519 = vmatprep.subr.mxu0 0.0
    %520 = vmatpush2.msra.mxu0 0.0
    %521 = vmatprep.subr.mxu0 0.0
    %522 = vmatpush2.msra.mxu0 0.0
    %523 = vmatprep.subr.mxu0 0.0
    %524 = vmatpush2.msra.mxu0 0.0
    %525 = vmatprep.subr.mxu0 0.0
    %526 = vmatpush2.msra.mxu0 0.0
    %527 = vmatprep.subr.mxu0 0.0
    %528 = vmatpush2.msra.mxu0 0.0
    %529 = vmatprep.subr.mxu0 0.0
    %530 = vmatpush2.msra.mxu0 0.0
    %531 = vmatprep.subr.mxu0 0.0
    %532 = vmatpush2.msra.mxu0 0.0
    %533 = vmatprep.subr.mxu0 0.0
    %534 = vmatpush2.msra.mxu0 0.0
    %535 = vmatprep.subr.mxu0 0.0
    %536 = vmatpush2.msra.mxu0 0.0
    %537 = vmatprep.subr.mxu0 0.0
    %538 = vmatpush2.msra.mxu0 0.0
    %539 = vmatprep.subr.mxu0 0.0
    %540 = vmatpush2.msra.mxu0 0.0
    %541 = vmatprep.subr.mxu0 0.0
    %542 = vmatpush2.msra.mxu0 0.0
    %543 = vmatprep.subr.mxu0 0.0
    %544 = vmatpush2.msra.mxu0 0.0
    %545 = vmatprep.subr.mxu0 0.0
    %546 = vmatpush2.msra.mxu0 0.0
    %547 = vmatprep.subr.mxu0 0.0
    %548 = vmatpush2.msra.mxu0 0.0
    %549 = vmatprep.mubr.f32.mxu0 0.0
    %550 = vmatmul.mubr.f32.gmra.mxu0 %v476
    %v551 = vpop.f32.mrf.mxu0
    %v552 = vadd.f32 0.0, %v551
    %v553 = vpop.f32.mrf.mxu0
    %554 = vmatprep.mubr.f32.mxu0 0.0
    %555 = vmatmul.mubr.f32.gmra.mxu0 %v479
    %v556 = vpop.f32.mrf.mxu0
    %v557 = vadd.f32 0.0, %v556
    %v558 = vpop.f32.mrf.mxu0
    %559 = vdwg.mxu0
    %v560 = vmul.f32 %v552, %v366
    %v561 = vmul.f32 %v557, %v368
    %v562 = vmul.f32 %v465, %v470
    %v563 = vmul.f32 %v467, %v471
    %v565 = vsel %vm474, %v562, 0
    %v568 = vsel %vm474, %v563, 0
    %570 = vmatprep.subr.mxu0 0.0
    %571 = vmatpush1.msra.mxu0 0.0
    %572 = vmatprep.subr.mxu0 0.0
    %573 = vmatpush1.msra.mxu0 0.0
    %574 = vmatprep.subr.mxu0 0.0
    %575 = vmatpush1.msra.mxu0 0.0
    %576 = vmatprep.subr.mxu0 0.0
    %577 = vmatpush1.msra.mxu0 0.0
    %578 = vmatprep.subr.mxu0 0.0
    %579 = vmatpush1.msra.mxu0 0.0
    %580 = vmatprep.subr.mxu0 0.0
    %581 = vmatpush1.msra.mxu0 0.0
    %582 = vmatprep.subr.mxu0 0.0
    %583 = vmatpush1.msra.mxu0 0.0
    %584 = vmatprep.subr.mxu0 0.0
    %585 = vmatpush1.msra.mxu0 0.0
    %586 = vmatprep.subr.mxu0 0.0
    %587 = vmatpush1.msra.mxu0 0.0
    %588 = vmatprep.subr.mxu0 0.0
    %589 = vmatpush1.msra.mxu0 0.0
    %590 = vmatprep.subr.mxu0 0.0
    %591 = vmatpush1.msra.mxu0 0.0
    %592 = vmatprep.subr.mxu0 0.0
    %593 = vmatpush1.msra.mxu0 0.0
    %594 = vmatprep.subr.mxu0 0.0
    %595 = vmatpush1.msra.mxu0 0.0
    %596 = vmatprep.subr.mxu0 0.0
    %597 = vmatpush1.msra.mxu0 0.0
    %598 = vmatprep.subr.mxu0 0.0
    %599 = vmatpush1.msra.mxu0 0.0
    %600 = vmatprep.subr.mxu0 0.0
    %601 = vmatpush1.msra.mxu0 %v483
    %602 = vmatprep.subr.mxu0 0.0
    %603 = vmatpush2.msra.mxu0 0.0
    %604 = vmatprep.subr.mxu0 0.0
    %605 = vmatpush2.msra.mxu0 0.0
    %606 = vmatprep.subr.mxu0 0.0
    %607 = vmatpush2.msra.mxu0 0.0
    %608 = vmatprep.subr.mxu0 0.0
    %609 = vmatpush2.msra.mxu0 0.0
    %610 = vmatprep.subr.mxu0 0.0
    %611 = vmatpush2.msra.mxu0 0.0
    %612 = vmatprep.subr.mxu0 0.0
    %613 = vmatpush2.msra.mxu0 0.0
    %614 = vmatprep.subr.mxu0 0.0
    %615 = vmatpush2.msra.mxu0 0.0
    %616 = vmatprep.subr.mxu0 0.0
    %617 = vmatpush2.msra.mxu0 0.0
    %618 = vmatprep.subr.mxu0 0.0
    %619 = vmatpush2.msra.mxu0 0.0
    %620 = vmatprep.subr.mxu0 0.0
    %621 = vmatpush2.msra.mxu0 0.0
    %622 = vmatprep.subr.mxu0 0.0
    %623 = vmatpush2.msra.mxu0 0.0
    %624 = vmatprep.subr.mxu0 0.0
    %625 = vmatpush2.msra.mxu0 0.0
    %626 = vmatprep.subr.mxu0 0.0
    %627 = vmatpush2.msra.mxu0 0.0
    %628 = vmatprep.subr.mxu0 0.0
    %629 = vmatpush2.msra.mxu0 0.0
    %630 = vmatprep.subr.mxu0 0.0
    %631 = vmatpush2.msra.mxu0 0.0
    %632 = vmatprep.subr.mxu0 0.0
    %633 = vmatpush2.msra.mxu0 0.0
    %634 = vmatprep.mubr.f32.mxu0 0.0
    %635 = vmatmul.mubr.f32.gmra.mxu0 %v565
    %v636 = vpop.f32.mrf.mxu0
    %v637 = vadd.f32 0.0, %v636
    %v638 = vpop.f32.mrf.mxu0
    %639 = vmatprep.mubr.f32.mxu0 0.0
    %640 = vmatmul.mubr.f32.gmra.mxu0 %v568
    %v641 = vpop.f32.mrf.mxu0
    %v642 = vadd.f32 0.0, %v641
    %v643 = vpop.f32.mrf.mxu0
    %644 = vdwg.mxu0
    %v645 = vmul.f32 %v637, %v368
    %v646 = vmul.f32 %v642, %v366
    %v647 = vadd.f32 %v560, %v645
    %v648 = vadd.f32 %v561, %v646
    %v649 = vld [vmem:[#allocation6 + $0x8] sm:$0xff]
    %v650 = vld [vmem:[#allocation6 + $0x28] sm:$0xff]
    %v651 = vld [vmem:[#allocation6 + $0x48] sm:$0xff]
    %v652 = vld [vmem:[#allocation6 + $0x68] sm:$0xff]
    %v653 = vld [vmem:[#allocation7 + $0x1] sm:$0x1]
    %v655 = vlaneseq
    %v656 = vshrl.u32 %v655, 7
    %v657 = vsub.s32 0, %v656
    %v658 = vrot.slane %v653, %v657
    %v661 = vsel %vm192, %v647, 0
    %v664 = vsel %vm192, %v648, 0
    %666 = vmatprep.subr.mxu0 0.0
    %667 = vmatpush1.msra.mxu0 0.0
    %668 = vmatprep.subr.mxu0 0.0
    %669 = vmatpush1.msra.mxu0 0.0
    %670 = vmatprep.subr.mxu0 0.0
    %671 = vmatpush1.msra.mxu0 0.0
    %672 = vmatprep.subr.mxu0 0.0
    %673 = vmatpush1.msra.mxu0 0.0
    %674 = vmatprep.subr.mxu0 0.0
    %675 = vmatpush1.msra.mxu0 0.0
    %676 = vmatprep.subr.mxu0 0.0
    %677 = vmatpush1.msra.mxu0 0.0
    %678 = vmatprep.subr.mxu0 0.0
    %679 = vmatpush1.msra.mxu0 0.0
    %680 = vmatprep.subr.mxu0 0.0
    %681 = vmatpush1.msra.mxu0 0.0
    %682 = vmatprep.subr.mxu0 0.0
    %683 = vmatpush1.msra.mxu0 0.0
    %684 = vmatprep.subr.mxu0 0.0
    %685 = vmatpush1.msra.mxu0 0.0
    %686 = vmatprep.subr.mxu0 0.0
    %687 = vmatpush1.msra.mxu0 0.0
    %688 = vmatprep.subr.mxu0 0.0
    %689 = vmatpush1.msra.mxu0 0.0
    %690 = vmatprep.subr.mxu0 0.0
    %691 = vmatpush1.msra.mxu0 %v652
    %692 = vmatprep.subr.mxu0 0.0
    %693 = vmatpush1.msra.mxu0 %v651
    %694 = vmatprep.subr.mxu0 0.0
    %695 = vmatpush1.msra.mxu0 %v650
    %696 = vmatprep.subr.mxu0 0.0
    %697 = vmatpush1.msra.mxu0 %v649
    %698 = vmatprep.subr.mxu0 0.0
    %699 = vmatpush2.msra.mxu0 0.0
    %700 = vmatprep.subr.mxu0 0.0
    %701 = vmatpush2.msra.mxu0 0.0
    %702 = vmatprep.subr.mxu0 0.0
    %703 = vmatpush2.msra.mxu0 0.0
    %704 = vmatprep.subr.mxu0 0.0
    %705 = vmatpush2.msra.mxu0 0.0
    %706 = vmatprep.subr.mxu0 0.0
    %707 = vmatpush2.msra.mxu0 0.0
    %708 = vmatprep.subr.mxu0 0.0
    %709 = vmatpush2.msra.mxu0 0.0
    %710 = vmatprep.subr.mxu0 0.0
    %711 = vmatpush2.msra.mxu0 0.0
    %712 = vmatprep.subr.mxu0 0.0
    %713 = vmatpush2.msra.mxu0 0.0
    %714 = vmatprep.subr.mxu0 0.0
    %715 = vmatpush2.msra.mxu0 0.0
    %716 = vmatprep.subr.mxu0 0.0
    %717 = vmatpush2.msra.mxu0 0.0
    %718 = vmatprep.subr.mxu0 0.0
    %719 = vmatpush2.msra.mxu0 0.0
    %720 = vmatprep.subr.mxu0 0.0
    %721 = vmatpush2.msra.mxu0 0.0
    %722 = vmatprep.subr.mxu0 0.0
    %723 = vmatpush2.msra.mxu0 0.0
    %724 = vmatprep.subr.mxu0 0.0
    %725 = vmatpush2.msra.mxu0 0.0
    %726 = vmatprep.subr.mxu0 0.0
    %727 = vmatpush2.msra.mxu0 0.0
    %728 = vmatprep.subr.mxu0 0.0
    %729 = vmatpush2.msra.mxu0 0.0
    %730 = vmatprep.mubr.f32.mxu0 0.0
    %731 = vmatmul.mubr.f32.gmra.mxu0 %v661
    %v732 = vpop.f32.mrf.mxu0
    %v733 = vadd.f32 %v658, %v732
    %v734 = vpop.f32.mrf.mxu0
    %735 = vmatprep.mubr.f32.mxu0 0.0
    %736 = vmatmul.mubr.f32.gmra.mxu0 %v664
    %v737 = vpop.f32.mrf.mxu0
    %v738 = vadd.f32 %v658, %v737
    %v739 = vpop.f32.mrf.mxu0
    %740 = vdwg.mxu0
    %v741 = vadd.f32 %v168, %v733
    %v742 = vadd.f32 %v173, %v738
    %v743 = vld [vmem:[#allocation7 + $0x2] sm:$0x1]
    %v744 = vld [vmem:[#allocation7 + $0x3] sm:$0x1]
    %v745 = vsel %vm192, %v741, 0.0
    %746 = vadd.xlane.f32.xlu0 %v745
    %v747 = vpop.xlane.xlu0 %746
    %v748 = vsel %vm192, %v742, 0.0
    %749 = vadd.xlane.f32.xlu0 %v748
    %v750 = vpop.xlane.xlu0 %749
    %v751 = vrcp.pop 32.0
    %v752 = vmul.f32 %v747, %v751
    %v753 = vmul.f32 %v750, %v751
    %v754 = vsub.f32 %v741, %v752
    %v755 = vsub.f32 %v742, %v753
    %v756 = vmul.f32 %v754, %v754
    %v757 = vmul.f32 %v755, %v755
    %v758 = vsel %vm192, %v756, 0.0
    %759 = vadd.xlane.f32.xlu0 %v758
    %v760 = vpop.xlane.xlu0 %759
    %v761 = vsel %vm192, %v757, 0.0
    %762 = vadd.xlane.f32.xlu0 %v761
    %v763 = vpop.xlane.xlu0 %762
    %v764 = vmul.f32 %v760, %v751
    %v765 = vmul.f32 %v763, %v751
    %v766 = vadd.f32 %v764, 1e-05
    %v767 = vadd.f32 %v765, 1e-05
    %v768 = vrsqrt.pop %v766
    %v769 = vrsqrt.pop %v767
    %v770 = vmul.f32 %v754, %v768
    %v771 = vmul.f32 %v755, %v769
    %v773 = vlaneseq
    %v774 = vshrl.u32 %v773, 7
    %v775 = vsub.s32 0, %v774
    %v776 = vrot.slane %v743, %v775
    %v778 = vmul.f32 %v770, %v776
    %v779 = vmul.f32 %v771, %v776
    %v781 = vlaneseq
    %v782 = vshrl.u32 %v781, 7
    %v783 = vsub.s32 0, %v782
    %v784 = vrot.slane %v744, %v783
    %v786 = vadd.f32 %v778, %v784
    %v787 = vadd.f32 %v779, %v784
    %v788 = vld [vmem:[#allocation6 + $0x10] sm:$0xff]
    %v789 = vld [vmem:[#allocation6 + $0x30] sm:$0xff]
    %v790 = vld [vmem:[#allocation6 + $0x50] sm:$0xff]
    %v791 = vld [vmem:[#allocation6 + $0x70] sm:$0xff]
    %v792 = vld [vmem:[#allocation7 + $0x4] sm:$0x1]
    %v794 = vlaneseq
    %v795 = vshrl.u32 %v794, 7
    %v796 = vsub.s32 0, %v795
    %v797 = vrot.slane %v792, %v796
    %v800 = vsel %vm192, %v786, 0
    %v803 = vsel %vm192, %v787, 0
    %805 = vmatprep.subr.mxu0 0.0
    %806 = vmatpush1.msra.mxu0 0.0
    %807 = vmatprep.subr.mxu0 0.0
    %808 = vmatpush1.msra.mxu0 0.0
    %809 = vmatprep.subr.mxu0 0.0
    %810 = vmatpush1.msra.mxu0 0.0
    %811 = vmatprep.subr.mxu0 0.0
    %812 = vmatpush1.msra.mxu0 0.0
    %813 = vmatprep.subr.mxu0 0.0
    %814 = vmatpush1.msra.mxu0 0.0
    %815 = vmatprep.subr.mxu0 0.0
    %816 = vmatpush1.msra.mxu0 0.0
    %817 = vmatprep.subr.mxu0 0.0
    %818 = vmatpush1.msra.mxu0 0.0
    %819 = vmatprep.subr.mxu0 0.0
    %820 = vmatpush1.msra.mxu0 0.0
    %821 = vmatprep.subr.mxu0 0.0
    %822 = vmatpush1.msra.mxu0 0.0
    %823 = vmatprep.subr.mxu0 0.0
    %824 = vmatpush1.msra.mxu0 0.0
    %825 = vmatprep.subr.mxu0 0.0
    %826 = vmatpush1.msra.mxu0 0.0
    %827 = vmatprep.subr.mxu0 0.0
    %828 = vmatpush1.msra.mxu0 0.0
    %829 = vmatprep.subr.mxu0 0.0
    %830 = vmatpush1.msra.mxu0 %v791
    %831 = vmatprep.subr.mxu0 0.0
    %832 = vmatpush1.msra.mxu0 %v790
    %833 = vmatprep.subr.mxu0 0.0
    %834 = vmatpush1.msra.mxu0 %v789
    %835 = vmatprep.subr.mxu0 0.0
    %836 = vmatpush1.msra.mxu0 %v788
    %837 = vmatprep.subr.mxu0 0.0
    %838 = vmatpush2.msra.mxu0 0.0
    %839 = vmatprep.subr.mxu0 0.0
    %840 = vmatpush2.msra.mxu0 0.0
    %841 = vmatprep.subr.mxu0 0.0
    %842 = vmatpush2.msra.mxu0 0.0
    %843 = vmatprep.subr.mxu0 0.0
    %844 = vmatpush2.msra.mxu0 0.0
    %845 = vmatprep.subr.mxu0 0.0
    %846 = vmatpush2.msra.mxu0 0.0
    %847 = vmatprep.subr.mxu0 0.0
    %848 = vmatpush2.msra.mxu0 0.0
    %849 = vmatprep.subr.mxu0 0.0
    %850 = vmatpush2.msra.mxu0 0.0
    %851 = vmatprep.subr.mxu0 0.0
    %852 = vmatpush2.msra.mxu0 0.0
    %853 = vmatprep.subr.mxu0 0.0
    %854 = vmatpush2.msra.mxu0 0.0
    %855 = vmatprep.subr.mxu0 0.0
    %856 = vmatpush2.msra.mxu0 0.0
    %857 = vmatprep.subr.mxu0 0.0
    %858 = vmatpush2.msra.mxu0 0.0
    %859 = vmatprep.subr.mxu0 0.0
    %860 = vmatpush2.msra.mxu0 0.0
    %861 = vmatprep.subr.mxu0 0.0
    %862 = vmatpush2.msra.mxu0 0.0
    %863 = vmatprep.subr.mxu0 0.0
    %864 = vmatpush2.msra.mxu0 0.0
    %865 = vmatprep.subr.mxu0 0.0
    %866 = vmatpush2.msra.mxu0 0.0
    %867 = vmatprep.subr.mxu0 0.0
    %868 = vmatpush2.msra.mxu0 0.0
    %869 = vmatprep.mubr.f32.mxu0 0.0
    %870 = vmatmul.mubr.f32.gmra.mxu0 %v800
    %v871 = vpop.f32.mrf.mxu0
    %v872 = vadd.f32 %v797, %v871
    %v873 = vpop.f32.mrf.mxu0
    %874 = vmatprep.mubr.f32.mxu0 0.0
    %875 = vmatmul.mubr.f32.gmra.mxu0 %v803
    %v876 = vpop.f32.mrf.mxu0
    %v877 = vadd.f32 %v797, %v876
    %v878 = vpop.f32.mrf.mxu0
    %879 = vdwg.mxu0
    %v880 = vmax.f32 %v872, 0.0
    %v881 = vmax.f32 %v877, 0.0
    %v882 = vld [vmem:[#allocation6 + $0x18] sm:$0xff]
    %v883 = vld [vmem:[#allocation6 + $0x38] sm:$0xff]
    %v884 = vld [vmem:[#allocation6 + $0x58] sm:$0xff]
    %v885 = vld [vmem:[#allocation6 + $0x78] sm:$0xff]
    %v886 = vld [vmem:[#allocation6 + $0x98] sm:$0xff]
    %v887 = vld [vmem:[#allocation6 + $0xb8] sm:$0xff]
    %v888 = vld [vmem:[#allocation6 + $0xd8] sm:$0xff]
    %v889 = vld [vmem:[#allocation6 + $0xf8] sm:$0xff]
    %v890 = vld [vmem:[#allocation7 + $0x5] sm:$0x1]
    %v892 = vlaneseq
    %v893 = vshrl.u32 %v892, 7
    %v894 = vsub.s32 0, %v893
    %v895 = vrot.slane %v890, %v894
    %vm897 = vcmask 523264
    %v899 = vsel %vm897, %v880, 0
    %v902 = vsel %vm897, %v881, 0
    %904 = vmatprep.subr.mxu0 0.0
    %905 = vmatpush1.msra.mxu0 0.0
    %906 = vmatprep.subr.mxu0 0.0
    %907 = vmatpush1.msra.mxu0 0.0
    %908 = vmatprep.subr.mxu0 0.0
    %909 = vmatpush1.msra.mxu0 0.0
    %910 = vmatprep.subr.mxu0 0.0
    %911 = vmatpush1.msra.mxu0 0.0
    %912 = vmatprep.subr.mxu0 0.0
    %913 = vmatpush1.msra.mxu0 0.0
    %914 = vmatprep.subr.mxu0 0.0
    %915 = vmatpush1.msra.mxu0 0.0
    %916 = vmatprep.subr.mxu0 0.0
    %917 = vmatpush1.msra.mxu0 0.0
    %918 = vmatprep.subr.mxu0 0.0
    %919 = vmatpush1.msra.mxu0 0.0
    %920 = vmatprep.subr.mxu0 0.0
    %921 = vmatpush1.msra.mxu0 %v889
    %922 = vmatprep.subr.mxu0 0.0
    %923 = vmatpush1.msra.mxu0 %v888
    %924 = vmatprep.subr.mxu0 0.0
    %925 = vmatpush1.msra.mxu0 %v887
    %926 = vmatprep.subr.mxu0 0.0
    %927 = vmatpush1.msra.mxu0 %v886
    %928 = vmatprep.subr.mxu0 0.0
    %929 = vmatpush1.msra.mxu0 %v885
    %930 = vmatprep.subr.mxu0 0.0
    %931 = vmatpush1.msra.mxu0 %v884
    %932 = vmatprep.subr.mxu0 0.0
    %933 = vmatpush1.msra.mxu0 %v883
    %934 = vmatprep.subr.mxu0 0.0
    %935 = vmatpush1.msra.mxu0 %v882
    %936 = vmatprep.subr.mxu0 0.0
    %937 = vmatpush2.msra.mxu0 0.0
    %938 = vmatprep.subr.mxu0 0.0
    %939 = vmatpush2.msra.mxu0 0.0
    %940 = vmatprep.subr.mxu0 0.0
    %941 = vmatpush2.msra.mxu0 0.0
    %942 = vmatprep.subr.mxu0 0.0
    %943 = vmatpush2.msra.mxu0 0.0
    %944 = vmatprep.subr.mxu0 0.0
    %945 = vmatpush2.msra.mxu0 0.0
    %946 = vmatprep.subr.mxu0 0.0
    %947 = vmatpush2.msra.mxu0 0.0
    %948 = vmatprep.subr.mxu0 0.0
    %949 = vmatpush2.msra.mxu0 0.0
    %950 = vmatprep.subr.mxu0 0.0
    %951 = vmatpush2.msra.mxu0 0.0
    %952 = vmatprep.subr.mxu0 0.0
    %953 = vmatpush2.msra.mxu0 0.0
    %954 = vmatprep.subr.mxu0 0.0
    %955 = vmatpush2.msra.mxu0 0.0
    %956 = vmatprep.subr.mxu0 0.0
    %957 = vmatpush2.msra.mxu0 0.0
    %958 = vmatprep.subr.mxu0 0.0
    %959 = vmatpush2.msra.mxu0 0.0
    %960 = vmatprep.subr.mxu0 0.0
    %961 = vmatpush2.msra.mxu0 0.0
    %962 = vmatprep.subr.mxu0 0.0
    %963 = vmatpush2.msra.mxu0 0.0
    %964 = vmatprep.subr.mxu0 0.0
    %965 = vmatpush2.msra.mxu0 0.0
    %966 = vmatprep.subr.mxu0 0.0
    %967 = vmatpush2.msra.mxu0 0.0
    %968 = vmatprep.mubr.f32.mxu0 0.0
    %969 = vmatmul.mubr.f32.gmra.mxu0 %v899
    %v970 = vpop.f32.mrf.mxu0
    %v971 = vadd.f32 %v895, %v970
    %v972 = vpop.f32.mrf.mxu0
    %973 = vmatprep.mubr.f32.mxu0 0.0
    %974 = vmatmul.mubr.f32.gmra.mxu0 %v902
    %v975 = vpop.f32.mrf.mxu0
    %v976 = vadd.f32 %v895, %v975
    %v977 = vpop.f32.mrf.mxu0
    %978 = vdwg.mxu0
    %v979 = vadd.f32 %v786, %v971
    %v980 = vadd.f32 %v787, %v976
    %v981 = vld [vmem:[#allocation7 + $0x6] sm:$0x1]
    %v982 = vld [vmem:[#allocation7 + $0x7] sm:$0x1]
    %v983 = vsel %vm192, %v979, 0.0
    %984 = vadd.xlane.f32.xlu0 %v983
    %v985 = vpop.xlane.xlu0 %984
    %v986 = vsel %vm192, %v980, 0.0
    %987 = vadd.xlane.f32.xlu0 %v986
    %v988 = vpop.xlane.xlu0 %987
    %v989 = vmul.f32 %v985, %v751
    %v990 = vmul.f32 %v988, %v751
    %v991 = vsub.f32 %v979, %v989
    %v992 = vsub.f32 %v980, %v990
    %v993 = vmul.f32 %v991, %v991
    %v994 = vmul.f32 %v992, %v992
    %v995 = vsel %vm192, %v993, 0.0
    %996 = vadd.xlane.f32.xlu0 %v995
    %v997 = vpop.xlane.xlu0 %996
    %v998 = vsel %vm192, %v994, 0.0
    %999 = vadd.xlane.f32.xlu0 %v998
    %v1000 = vpop.xlane.xlu0 %999
    %v1001 = vmul.f32 %v997, %v751
    %v1002 = vmul.f32 %v1000, %v751
    %v1003 = vadd.f32 %v1001, 1e-05
    %v1004 = vadd.f32 %v1002, 1e-05
    %v1005 = vrsqrt.pop %v1003
    %v1006 = vrsqrt.pop %v1004
    %v1007 = vmul.f32 %v991, %v1005
    %v1008 = vmul.f32 %v992, %v1006
    %v1010 = vlaneseq
    %v1011 = vshrl.u32 %v1010, 7
    %v1012 = vsub.s32 0, %v1011
    %v1013 = vrot.slane %v981, %v1012
    %v1015 = vmul.f32 %v1007, %v1013
    %v1016 = vmul.f32 %v1008, %v1013
    %v1018 = vlaneseq
    %v1019 = vshrl.u32 %v1018, 7
    %v1020 = vsub.s32 0, %v1019
    %v1021 = vrot.slane %v982, %v1020
    %v1023 = vadd.f32 %v1015, %v1021
    %v1024 = vadd.f32 %v1016, %v1021
    %s1025 = scalar_lea.vmem [#allocation6], 256
    %v1026 = vld [vmem:[%s1025] sm:$0xff]
    %v1027 = vld [vmem:[%s1025 + $0x20] sm:$0xff]
    %v1028 = vld [vmem:[%s1025 + $0x40] sm:$0xff]
    %v1029 = vld [vmem:[%s1025 + $0x60] sm:$0xff]
    %s1030 = scalar_lea.vmem [#allocation7], 8
    %v1031 = vld [vmem:[%s1030] sm:$0x1]
    %v1033 = vlaneseq
    %v1034 = vshrl.u32 %v1033, 7
    %v1035 = vsub.s32 0, %v1034
    %v1036 = vrot.slane %v1031, %v1035
    %v1039 = vsel %vm192, %v1023, 0
    %v1042 = vsel %vm192, %v1024, 0
    %1044 = vmatprep.subr.mxu0 0.0
    %1045 = vmatpush1.msra.mxu0 0.0
    %1046 = vmatprep.subr.mxu0 0.0
    %1047 = vmatpush1.msra.mxu0 0.0
    %1048 = vmatprep.subr.mxu0 0.0
    %1049 = vmatpush1.msra.mxu0 0.0
    %1050 = vmatprep.subr.mxu0 0.0
    %1051 = vmatpush1.msra.mxu0 0.0
    %1052 = vmatprep.subr.mxu0 0.0
    %1053 = vmatpush1.msra.mxu0 0.0
    %1054 = vmatprep.subr.mxu0 0.0
    %1055 = vmatpush1.msra.mxu0 0.0
    %1056 = vmatprep.subr.mxu0 0.0
    %1057 = vmatpush1.msra.mxu0 0.0
    %1058 = vmatprep.subr.mxu0 0.0
    %1059 = vmatpush1.msra.mxu0 0.0
    %1060 = vmatprep.subr.mxu0 0.0
    %1061 = vmatpush1.msra.mxu0 0.0
    %1062 = vmatprep.subr.mxu0 0.0
    %1063 = vmatpush1.msra.mxu0 0.0
    %1064 = vmatprep.subr.mxu0 0.0
    %1065 = vmatpush1.msra.mxu0 0.0
    %1066 = vmatprep.subr.mxu0 0.0
    %1067 = vmatpush1.msra.mxu0 0.0
    %1068 = vmatprep.subr.mxu0 0.0
    %1069 = vmatpush1.msra.mxu0 %v1029
    %1070 = vmatprep.subr.mxu0 0.0
    %1071 = vmatpush1.msra.mxu0 %v1028
    %1072 = vmatprep.subr.mxu0 0.0
    %1073 = vmatpush1.msra.mxu0 %v1027
    %1074 = vmatprep.subr.mxu0 0.0
    %1075 = vmatpush1.msra.mxu0 %v1026
    %1076 = vmatprep.subr.mxu0 0.0
    %1077 = vmatpush2.msra.mxu0 0.0
    %1078 = vmatprep.subr.mxu0 0.0
    %1079 = vmatpush2.msra.mxu0 0.0
    %1080 = vmatprep.subr.mxu0 0.0
    %1081 = vmatpush2.msra.mxu0 0.0
    %1082 = vmatprep.subr.mxu0 0.0
    %1083 = vmatpush2.msra.mxu0 0.0
    %1084 = vmatprep.subr.mxu0 0.0
    %1085 = vmatpush2.msra.mxu0 0.0
    %1086 = vmatprep.subr.mxu0 0.0
    %1087 = vmatpush2.msra.mxu0 0.0
    %1088 = vmatprep.subr.mxu0 0.0
    %1089 = vmatpush2.msra.mxu0 0.0
    %1090 = vmatprep.subr.mxu0 0.0
    %1091 = vmatpush2.msra.mxu0 0.0
    %1092 = vmatprep.subr.mxu0 0.0
    %1093 = vmatpush2.msra.mxu0 0.0
    %1094 = vmatprep.subr.mxu0 0.0
    %1095 = vmatpush2.msra.mxu0 0.0
    %1096 = vmatprep.subr.mxu0 0.0
    %1097 = vmatpush2.msra.mxu0 0.0
    %1098 = vmatprep.subr.mxu0 0.0
    %1099 = vmatpush2.msra.mxu0 0.0
    %1100 = vmatprep.subr.mxu0 0.0
    %1101 = vmatpush2.msra.mxu0 0.0
    %1102 = vmatprep.subr.mxu0 0.0
    %1103 = vmatpush2.msra.mxu0 0.0
    %1104 = vmatprep.subr.mxu0 0.0
    %1105 = vmatpush2.msra.mxu0 0.0
    %1106 = vmatprep.subr.mxu0 0.0
    %1107 = vmatpush2.msra.mxu0 0.0
    %1108 = vmatprep.mubr.f32.mxu0 0.0
    %1109 = vmatmul.mubr.f32.gmra.mxu0 %v1039
    %v1110 = vpop.f32.mrf.mxu0
    %v1111 = vadd.f32 %v1036, %v1110
    %v1112 = vpop.f32.mrf.mxu0
    %1113 = vmatprep.mubr.f32.mxu0 0.0
    %1114 = vmatmul.mubr.f32.gmra.mxu0 %v1042
    %v1115 = vpop.f32.mrf.mxu0
    %v1116 = vadd.f32 %v1036, %v1115
    %v1117 = vpop.f32.mrf.mxu0
    %1118 = vdwg.mxu0
    %1121 = vrot.lane.b32.xlu0 %v1111, 96
    %v1122 = vpop.permute.xlu0 %1121
    %1123 = vrot.lane.b32.xlu0 %v1116, 96
    %v1124 = vpop.permute.xlu0 %1123
    %v1127 = vmul.f32 %v1111, %v1122
    %v1128 = vmul.f32 %v1116, %v1124
    %v1130 = vsel %vm192, %v1127, 0
    %v1133 = vsel %vm192, %v1128, 0
    %1135 = vmatprep.subr.mxu0 0.0
    %1136 = vmatpush1.msra.mxu0 0.0
    %1137 = vmatprep.subr.mxu0 0.0
    %1138 = vmatpush1.msra.mxu0 0.0
    %1139 = vmatprep.subr.mxu0 0.0
    %1140 = vmatpush1.msra.mxu0 0.0
    %1141 = vmatprep.subr.mxu0 0.0
    %1142 = vmatpush1.msra.mxu0 0.0
    %1143 = vmatprep.subr.mxu0 0.0
    %1144 = vmatpush1.msra.mxu0 0.0
    %1145 = vmatprep.subr.mxu0 0.0
    %1146 = vmatpush1.msra.mxu0 0.0
    %1147 = vmatprep.subr.mxu0 0.0
    %1148 = vmatpush1.msra.mxu0 0.0
    %1149 = vmatprep.subr.mxu0 0.0
    %1150 = vmatpush1.msra.mxu0 0.0
    %1151 = vmatprep.subr.mxu0 0.0
    %1152 = vmatpush1.msra.mxu0 0.0
    %1153 = vmatprep.subr.mxu0 0.0
    %1154 = vmatpush1.msra.mxu0 0.0
    %1155 = vmatprep.subr.mxu0 0.0
    %1156 = vmatpush1.msra.mxu0 0.0
    %1157 = vmatprep.subr.mxu0 0.0
    %1158 = vmatpush1.msra.mxu0 0.0
    %1159 = vmatprep.subr.mxu0 0.0
    %1160 = vmatpush1.msra.mxu0 %v179
    %1161 = vmatprep.subr.mxu0 0.0
    %1162 = vmatpush1.msra.mxu0 %v178
    %1163 = vmatprep.subr.mxu0 0.0
    %1164 = vmatpush1.msra.mxu0 %v177
    %1165 = vmatprep.subr.mxu0 0.0
    %1166 = vmatpush1.msra.mxu0 %v176
    %1167 = vmatprep.subr.mxu0 0.0
    %1168 = vmatpush2.msra.mxu0 0.0
    %1169 = vmatprep.subr.mxu0 0.0
    %1170 = vmatpush2.msra.mxu0 0.0
    %1171 = vmatprep.subr.mxu0 0.0
    %1172 = vmatpush2.msra.mxu0 0.0
    %1173 = vmatprep.subr.mxu0 0.0
    %1174 = vmatpush2.msra.mxu0 0.0
    %1175 = vmatprep.subr.mxu0 0.0
    %1176 = vmatpush2.msra.mxu0 0.0
    %1177 = vmatprep.subr.mxu0 0.0
    %1178 = vmatpush2.msra.mxu0 0.0
    %1179 = vmatprep.subr.mxu0 0.0
    %1180 = vmatpush2.msra.mxu0 0.0
    %1181 = vmatprep.subr.mxu0 0.0
    %1182 = vmatpush2.msra.mxu0 0.0
    %1183 = vmatprep.subr.mxu0 0.0
    %1184 = vmatpush2.msra.mxu0 0.0
    %1185 = vmatprep.subr.mxu0 0.0
    %1186 = vmatpush2.msra.mxu0 0.0
    %1187 = vmatprep.subr.mxu0 0.0
    %1188 = vmatpush2.msra.mxu0 0.0
    %1189 = vmatprep.subr.mxu0 0.0
    %1190 = vmatpush2.msra.mxu0 0.0
    %1191 = vmatprep.subr.mxu0 0.0
    %1192 = vmatpush2.msra.mxu0 0.0
    %1193 = vmatprep.subr.mxu0 0.0
    %1194 = vmatpush2.msra.mxu0 0.0
    %1195 = vmatprep.subr.mxu0 0.0
    %1196 = vmatpush2.msra.mxu0 0.0
    %1197 = vmatprep.subr.mxu0 0.0
    %1198 = vmatpush2.msra.mxu0 0.0
    %1199 = vmatprep.mubr.f32.mxu0 0.0
    %1200 = vmatmul.mubr.f32.gmra.mxu0 %v1130
    %v1201 = vpop.f32.mrf.mxu0
    %v1202 = vadd.f32 0.0, %v1201
    %v1203 = vpop.f32.mrf.mxu0
    %1204 = vmatprep.mubr.f32.mxu0 0.0
    %1205 = vmatmul.mubr.f32.gmra.mxu0 %v1133
    %v1206 = vpop.f32.mrf.mxu0
    %v1207 = vadd.f32 0.0, %v1206
    %v1208 = vpop.f32.mrf.mxu0
    %1209 = vdwg.mxu0
    %1210 = vrot.lane.b32.xlu0 %v1111, 64
    %v1211 = vpop.permute.xlu0 %1210
    %1212 = vrot.lane.b32.xlu0 %v1116, 64
    %v1213 = vpop.permute.xlu0 %1212
    %v1216 = vmul.f32 %v1111, %v1124
    %v1217 = vmul.f32 %v1116, %v1122
    %v1219 = vsel %vm192, %v1216, 0
    %v1222 = vsel %vm192, %v1217, 0
    %1224 = vmatprep.subr.mxu0 0.0
    %1225 = vmatpush1.msra.mxu0 0.0
    %1226 = vmatprep.subr.mxu0 0.0
    %1227 = vmatpush1.msra.mxu0 0.0
    %1228 = vmatprep.subr.mxu0 0.0
    %1229 = vmatpush1.msra.mxu0 0.0
    %1230 = vmatprep.subr.mxu0 0.0
    %1231 = vmatpush1.msra.mxu0 0.0
    %1232 = vmatprep.subr.mxu0 0.0
    %1233 = vmatpush1.msra.mxu0 0.0
    %1234 = vmatprep.subr.mxu0 0.0
    %1235 = vmatpush1.msra.mxu0 0.0
    %1236 = vmatprep.subr.mxu0 0.0
    %1237 = vmatpush1.msra.mxu0 0.0
    %1238 = vmatprep.subr.mxu0 0.0
    %1239 = vmatpush1.msra.mxu0 0.0
    %1240 = vmatprep.subr.mxu0 0.0
    %1241 = vmatpush1.msra.mxu0 0.0
    %1242 = vmatprep.subr.mxu0 0.0
    %1243 = vmatpush1.msra.mxu0 0.0
    %1244 = vmatprep.subr.mxu0 0.0
    %1245 = vmatpush1.msra.mxu0 0.0
    %1246 = vmatprep.subr.mxu0 0.0
    %1247 = vmatpush1.msra.mxu0 0.0
    %1248 = vmatprep.subr.mxu0 0.0
    %1249 = vmatpush1.msra.mxu0 %v179
    %1250 = vmatprep.subr.mxu0 0.0
    %1251 = vmatpush1.msra.mxu0 %v178
    %1252 = vmatprep.subr.mxu0 0.0
    %1253 = vmatpush1.msra.mxu0 %v177
    %1254 = vmatprep.subr.mxu0 0.0
    %1255 = vmatpush1.msra.mxu0 %v176
    %1256 = vmatprep.subr.mxu0 0.0
    %1257 = vmatpush2.msra.mxu0 0.0
    %1258 = vmatprep.subr.mxu0 0.0
    %1259 = vmatpush2.msra.mxu0 0.0
    %1260 = vmatprep.subr.mxu0 0.0
    %1261 = vmatpush2.msra.mxu0 0.0
    %1262 = vmatprep.subr.mxu0 0.0
    %1263 = vmatpush2.msra.mxu0 0.0
    %1264 = vmatprep.subr.mxu0 0.0
    %1265 = vmatpush2.msra.mxu0 0.0
    %1266 = vmatprep.subr.mxu0 0.0
    %1267 = vmatpush2.msra.mxu0 0.0
    %1268 = vmatprep.subr.mxu0 0.0
    %1269 = vmatpush2.msra.mxu0 0.0
    %1270 = vmatprep.subr.mxu0 0.0
    %1271 = vmatpush2.msra.mxu0 0.0
    %1272 = vmatprep.subr.mxu0 0.0
    %1273 = vmatpush2.msra.mxu0 0.0
    %1274 = vmatprep.subr.mxu0 0.0
    %1275 = vmatpush2.msra.mxu0 0.0
    %1276 = vmatprep.subr.mxu0 0.0
    %1277 = vmatpush2.msra.mxu0 0.0
    %1278 = vmatprep.subr.mxu0 0.0
    %1279 = vmatpush2.msra.mxu0 0.0
    %1280 = vmatprep.subr.mxu0 0.0
    %1281 = vmatpush2.msra.mxu0 0.0
    %1282 = vmatprep.subr.mxu0 0.0
    %1283 = vmatpush2.msra.mxu0 0.0
    %1284 = vmatprep.subr.mxu0 0.0
    %1285 = vmatpush2.msra.mxu0 0.0
    %1286 = vmatprep.subr.mxu0 0.0
    %1287 = vmatpush2.msra.mxu0 0.0
    %1288 = vmatprep.mubr.f32.mxu0 0.0
    %1289 = vmatmul.mubr.f32.gmra.mxu0 %v1219
    %v1290 = vpop.f32.mrf.mxu0
    %v1291 = vadd.f32 0.0, %v1290
    %v1292 = vpop.f32.mrf.mxu0
    %1293 = vmatprep.mubr.f32.mxu0 0.0
    %1294 = vmatmul.mubr.f32.gmra.mxu0 %v1222
    %v1295 = vpop.f32.mrf.mxu0
    %v1296 = vadd.f32 0.0, %v1295
    %v1297 = vpop.f32.mrf.mxu0
    %1298 = vdwg.mxu0
    %v1299 = vmax.f32 %v1202, %v1291
    %v1300 = vmax.f32 %v1207, %v1296
    %v1301 = vsub.f32 %v1202, %v1299
    %v1302 = vsub.f32 %v1207, %v1300
    %v1303 = vmul.f32 %v1301, 1.442695
    %v1304 = vpow.pop %v1303
    %v1305 = vmul.f32 %v1302, 1.442695
    %v1306 = vpow.pop %v1305
    %v1307 = vsub.f32 %v1291, %v1299
    %v1308 = vsub.f32 %v1296, %v1300
    %v1309 = vmul.f32 %v1307, 1.442695
    %v1310 = vpow.pop %v1309
    %v1311 = vmul.f32 %v1308, 1.442695
    %v1312 = vpow.pop %v1311
    %v1313 = vadd.f32 %v1304, %v1310
    %v1314 = vadd.f32 %v1306, %v1312
    %v1315 = vrcp.pop %v1313
    %v1316 = vrcp.pop %v1314
    %v1317 = vmul.f32 %v1304, %v1315
    %v1318 = vmul.f32 %v1306, %v1316
    %v1320 = vsel %vm474, %v1317, 0
    %v1323 = vsel %vm474, %v1318, 0
    %1325 = vmatprep.subr.mxu0 0.0
    %1326 = vmatpush1.msra.mxu0 0.0
    %1327 = vmatprep.subr.mxu0 0.0
    %1328 = vmatpush1.msra.mxu0 0.0
    %1329 = vmatprep.subr.mxu0 0.0
    %1330 = vmatpush1.msra.mxu0 0.0
    %1331 = vmatprep.subr.mxu0 0.0
    %1332 = vmatpush1.msra.mxu0 0.0
    %1333 = vmatprep.subr.mxu0 0.0
    %1334 = vmatpush1.msra.mxu0 0.0
    %1335 = vmatprep.subr.mxu0 0.0
    %1336 = vmatpush1.msra.mxu0 0.0
    %1337 = vmatprep.subr.mxu0 0.0
    %1338 = vmatpush1.msra.mxu0 0.0
    %1339 = vmatprep.subr.mxu0 0.0
    %1340 = vmatpush1.msra.mxu0 0.0
    %1341 = vmatprep.subr.mxu0 0.0
    %1342 = vmatpush1.msra.mxu0 0.0
    %1343 = vmatprep.subr.mxu0 0.0
    %1344 = vmatpush1.msra.mxu0 0.0
    %1345 = vmatprep.subr.mxu0 0.0
    %1346 = vmatpush1.msra.mxu0 0.0
    %1347 = vmatprep.subr.mxu0 0.0
    %1348 = vmatpush1.msra.mxu0 0.0
    %1349 = vmatprep.subr.mxu0 0.0
    %1350 = vmatpush1.msra.mxu0 0.0
    %1351 = vmatprep.subr.mxu0 0.0
    %1352 = vmatpush1.msra.mxu0 0.0
    %1353 = vmatprep.subr.mxu0 0.0
    %1354 = vmatpush1.msra.mxu0 0.0
    %1355 = vmatprep.subr.mxu0 0.0
    %1356 = vmatpush1.msra.mxu0 %v483
    %1357 = vmatprep.subr.mxu0 0.0
    %1358 = vmatpush2.msra.mxu0 0.0
    %1359 = vmatprep.subr.mxu0 0.0
    %1360 = vmatpush2.msra.mxu0 0.0
    %1361 = vmatprep.subr.mxu0 0.0
    %1362 = vmatpush2.msra.mxu0 0.0
    %1363 = vmatprep.subr.mxu0 0.0
    %1364 = vmatpush2.msra.mxu0 0.0
    %1365 = vmatprep.subr.mxu0 0.0
    %1366 = vmatpush2.msra.mxu0 0.0
    %1367 = vmatprep.subr.mxu0 0.0
    %1368 = vmatpush2.msra.mxu0 0.0
    %1369 = vmatprep.subr.mxu0 0.0
    %1370 = vmatpush2.msra.mxu0 0.0
    %1371 = vmatprep.subr.mxu0 0.0
    %1372 = vmatpush2.msra.mxu0 0.0
    %1373 = vmatprep.subr.mxu0 0.0
    %1374 = vmatpush2.msra.mxu0 0.0
    %1375 = vmatprep.subr.mxu0 0.0
    %1376 = vmatpush2.msra.mxu0 0.0
    %1377 = vmatprep.subr.mxu0 0.0
    %1378 = vmatpush2.msra.mxu0 0.0
    %1379 = vmatprep.subr.mxu0 0.0
    %1380 = vmatpush2.msra.mxu0 0.0
    %1381 = vmatprep.subr.mxu0 0.0
    %1382 = vmatpush2.msra.mxu0 0.0
    %1383 = vmatprep.subr.mxu0 0.0
    %1384 = vmatpush2.msra.mxu0 0.0
    %1385 = vmatprep.subr.mxu0 0.0
    %1386 = vmatpush2.msra.mxu0 0.0
    %1387 = vmatprep.subr.mxu0 0.0
    %1388 = vmatpush2.msra.mxu0 0.0
    %1389 = vmatprep.mubr.f32.mxu0 0.0
    %1390 = vmatmul.mubr.f32.gmra.mxu0 %v1320
    %v1391 = vpop.f32.mrf.mxu0
    %v1392 = vadd.f32 0.0, %v1391
    %v1393 = vpop.f32.mrf.mxu0
    %1394 = vmatprep.mubr.f32.mxu0 0.0
    %1395 = vmatmul.mubr.f32.gmra.mxu0 %v1323
    %v1396 = vpop.f32.mrf.mxu0
    %v1397 = vadd.f32 0.0, %v1396
    %v1398 = vpop.f32.mrf.mxu0
    %1399 = vdwg.mxu0
    %v1400 = vmul.f32 %v1392, %v1211
    %v1401 = vmul.f32 %v1397, %v1213
    %v1402 = vmul.f32 %v1310, %v1315
    %v1403 = vmul.f32 %v1312, %v1316
    %v1405 = vsel %vm474, %v1402, 0
    %v1408 = vsel %vm474, %v1403, 0
    %1410 = vmatprep.subr.mxu0 0.0
    %1411 = vmatpush1.msra.mxu0 0.0
    %1412 = vmatprep.subr.mxu0 0.0
    %1413 = vmatpush1.msra.mxu0 0.0
    %1414 = vmatprep.subr.mxu0 0.0
    %1415 = vmatpush1.msra.mxu0 0.0
    %1416 = vmatprep.subr.mxu0 0.0
    %1417 = vmatpush1.msra.mxu0 0.0
    %1418 = vmatprep.subr.mxu0 0.0
    %1419 = vmatpush1.msra.mxu0 0.0
    %1420 = vmatprep.subr.mxu0 0.0
    %1421 = vmatpush1.msra.mxu0 0.0
    %1422 = vmatprep.subr.mxu0 0.0
    %1423 = vmatpush1.msra.mxu0 0.0
    %1424 = vmatprep.subr.mxu0 0.0
    %1425 = vmatpush1.msra.mxu0 0.0
    %1426 = vmatprep.subr.mxu0 0.0
    %1427 = vmatpush1.msra.mxu0 0.0
    %1428 = vmatprep.subr.mxu0 0.0
    %1429 = vmatpush1.msra.mxu0 0.0
    %1430 = vmatprep.subr.mxu0 0.0
    %1431 = vmatpush1.msra.mxu0 0.0
    %1432 = vmatprep.subr.mxu0 0.0
    %1433 = vmatpush1.msra.mxu0 0.0
    %1434 = vmatprep.subr.mxu0 0.0
    %1435 = vmatpush1.msra.mxu0 0.0
    %1436 = vmatprep.subr.mxu0 0.0
    %1437 = vmatpush1.msra.mxu0 0.0
    %1438 = vmatprep.subr.mxu0 0.0
    %1439 = vmatpush1.msra.mxu0 0.0
    %1440 = vmatprep.subr.mxu0 0.0
    %1441 = vmatpush1.msra.mxu0 %v483
    %1442 = vmatprep.subr.mxu0 0.0
    %1443 = vmatpush2.msra.mxu0 0.0
    %1444 = vmatprep.subr.mxu0 0.0
    %1445 = vmatpush2.msra.mxu0 0.0
    %1446 = vmatprep.subr.mxu0 0.0
    %1447 = vmatpush2.msra.mxu0 0.0
    %1448 = vmatprep.subr.mxu0 0.0
    %1449 = vmatpush2.msra.mxu0 0.0
    %1450 = vmatprep.subr.mxu0 0.0
    %1451 = vmatpush2.msra.mxu0 0.0
    %1452 = vmatprep.subr.mxu0 0.0
    %1453 = vmatpush2.msra.mxu0 0.0
    %1454 = vmatprep.subr.mxu0 0.0
    %1455 = vmatpush2.msra.mxu0 0.0
    %1456 = vmatprep.subr.mxu0 0.0
    %1457 = vmatpush2.msra.mxu0 0.0
    %1458 = vmatprep.subr.mxu0 0.0
    %1459 = vmatpush2.msra.mxu0 0.0
    %1460 = vmatprep.subr.mxu0 0.0
    %1461 = vmatpush2.msra.mxu0 0.0
    %1462 = vmatprep.subr.mxu0 0.0
    %1463 = vmatpush2.msra.mxu0 0.0
    %1464 = vmatprep.subr.mxu0 0.0
    %1465 = vmatpush2.msra.mxu0 0.0
    %1466 = vmatprep.subr.mxu0 0.0
    %1467 = vmatpush2.msra.mxu0 0.0
    %1468 = vmatprep.subr.mxu0 0.0
    %1469 = vmatpush2.msra.mxu0 0.0
    %1470 = vmatprep.subr.mxu0 0.0
    %1471 = vmatpush2.msra.mxu0 0.0
    %1472 = vmatprep.subr.mxu0 0.0
    %1473 = vmatpush2.msra.mxu0 0.0
    %1474 = vmatprep.mubr.f32.mxu0 0.0
    %1475 = vmatmul.mubr.f32.gmra.mxu0 %v1405
    %v1476 = vpop.f32.mrf.mxu0
    %v1477 = vadd.f32 0.0, %v1476
    %v1478 = vpop.f32.mrf.mxu0
    %1479 = vmatprep.mubr.f32.mxu0 0.0
    %1480 = vmatmul.mubr.f32.gmra.mxu0 %v1408
    %v1481 = vpop.f32.mrf.mxu0
    %v1482 = vadd.f32 0.0, %v1481
    %v1483 = vpop.f32.mrf.mxu0
    %1484 = vdwg.mxu0
    %v1485 = vmul.f32 %v1477, %v1213
    %v1486 = vmul.f32 %v1482, %v1211
    %v1487 = vadd.f32 %v1400, %v1485
    %v1488 = vadd.f32 %v1401, %v1486
    %v1489 = vld [vmem:[%s1025 + $0x8] sm:$0xff]
    %v1490 = vld [vmem:[%s1025 + $0x28] sm:$0xff]
    %v1491 = vld [vmem:[%s1025 + $0x48] sm:$0xff]
    %v1492 = vld [vmem:[%s1025 + $0x68] sm:$0xff]
    %v1493 = vld [vmem:[%s1030 + $0x1] sm:$0x1]
    %v1495 = vlaneseq
    %v1496 = vshrl.u32 %v1495, 7
    %v1497 = vsub.s32 0, %v1496
    %v1498 = vrot.slane %v1493, %v1497
    %v1501 = vsel %vm192, %v1487, 0
    %v1504 = vsel %vm192, %v1488, 0
    %1506 = vmatprep.subr.mxu0 0.0
    %1507 = vmatpush1.msra.mxu0 0.0
    %1508 = vmatprep.subr.mxu0 0.0
    %1509 = vmatpush1.msra.mxu0 0.0
    %1510 = vmatprep.subr.mxu0 0.0
    %1511 = vmatpush1.msra.mxu0 0.0
    %1512 = vmatprep.subr.mxu0 0.0
    %1513 = vmatpush1.msra.mxu0 0.0
    %1514 = vmatprep.subr.mxu0 0.0
    %1515 = vmatpush1.msra.mxu0 0.0
    %1516 = vmatprep.subr.mxu0 0.0
    %1517 = vmatpush1.msra.mxu0 0.0
    %1518 = vmatprep.subr.mxu0 0.0
    %1519 = vmatpush1.msra.mxu0 0.0
    %1520 = vmatprep.subr.mxu0 0.0
    %1521 = vmatpush1.msra.mxu0 0.0
    %1522 = vmatprep.subr.mxu0 0.0
    %1523 = vmatpush1.msra.mxu0 0.0
    %1524 = vmatprep.subr.mxu0 0.0
    %1525 = vmatpush1.msra.mxu0 0.0
    %1526 = vmatprep.subr.mxu0 0.0
    %1527 = vmatpush1.msra.mxu0 0.0
    %1528 = vmatprep.subr.mxu0 0.0
    %1529 = vmatpush1.msra.mxu0 0.0
    %1530 = vmatprep.subr.mxu0 0.0
    %1531 = vmatpush1.msra.mxu0 %v1492
    %1532 = vmatprep.subr.mxu0 0.0
    %1533 = vmatpush1.msra.mxu0 %v1491
    %1534 = vmatprep.subr.mxu0 0.0
    %1535 = vmatpush1.msra.mxu0 %v1490
    %1536 = vmatprep.subr.mxu0 0.0
    %1537 = vmatpush1.msra.mxu0 %v1489
    %1538 = vmatprep.subr.mxu0 0.0
    %1539 = vmatpush2.msra.mxu0 0.0
    %1540 = vmatprep.subr.mxu0 0.0
    %1541 = vmatpush2.msra.mxu0 0.0
    %1542 = vmatprep.subr.mxu0 0.0
    %1543 = vmatpush2.msra.mxu0 0.0
    %1544 = vmatprep.subr.mxu0 0.0
    %1545 = vmatpush2.msra.mxu0 0.0
    %1546 = vmatprep.subr.mxu0 0.0
    %1547 = vmatpush2.msra.mxu0 0.0
    %1548 = vmatprep.subr.mxu0 0.0
    %1549 = vmatpush2.msra.mxu0 0.0
    %1550 = vmatprep.subr.mxu0 0.0
    %1551 = vmatpush2.msra.mxu0 0.0
    %1552 = vmatprep.subr.mxu0 0.0
    %1553 = vmatpush2.msra.mxu0 0.0
    %1554 = vmatprep.subr.mxu0 0.0
    %1555 = vmatpush2.msra.mxu0 0.0
    %1556 = vmatprep.subr.mxu0 0.0
    %1557 = vmatpush2.msra.mxu0 0.0
    %1558 = vmatprep.subr.mxu0 0.0
    %1559 = vmatpush2.msra.mxu0 0.0
    %1560 = vmatprep.subr.mxu0 0.0
    %1561 = vmatpush2.msra.mxu0 0.0
    %1562 = vmatprep.subr.mxu0 0.0
    %1563 = vmatpush2.msra.mxu0 0.0
    %1564 = vmatprep.subr.mxu0 0.0
    %1565 = vmatpush2.msra.mxu0 0.0
    %1566 = vmatprep.subr.mxu0 0.0
    %1567 = vmatpush2.msra.mxu0 0.0
    %1568 = vmatprep.subr.mxu0 0.0
    %1569 = vmatpush2.msra.mxu0 0.0
    %1570 = vmatprep.mubr.f32.mxu0 0.0
    %1571 = vmatmul.mubr.f32.gmra.mxu0 %v1501
    %v1572 = vpop.f32.mrf.mxu0
    %v1573 = vadd.f32 %v1498, %v1572
    %v1574 = vpop.f32.mrf.mxu0
    %1575 = vmatprep.mubr.f32.mxu0 0.0
    %1576 = vmatmul.mubr.f32.gmra.mxu0 %v1504
    %v1577 = vpop.f32.mrf.mxu0
    %v1578 = vadd.f32 %v1498, %v1577
    %v1579 = vpop.f32.mrf.mxu0
    %1580 = vdwg.mxu0
    %v1581 = vadd.f32 %v1023, %v1573
    %v1582 = vadd.f32 %v1024, %v1578
    %v1583 = vld [vmem:[%s1030 + $0x2] sm:$0x1]
    %v1584 = vld [vmem:[%s1030 + $0x3] sm:$0x1]
    %v1585 = vsel %vm192, %v1581, 0.0
    %1586 = vadd.xlane.f32.xlu0 %v1585
    %v1587 = vpop.xlane.xlu0 %1586
    %v1588 = vsel %vm192, %v1582, 0.0
    %1589 = vadd.xlane.f32.xlu0 %v1588
    %v1590 = vpop.xlane.xlu0 %1589
    %v1591 = vmul.f32 %v1587, %v751
    %v1592 = vmul.f32 %v1590, %v751
    %v1593 = vsub.f32 %v1581, %v1591
    %v1594 = vsub.f32 %v1582, %v1592
    %v1595 = vmul.f32 %v1593, %v1593
    %v1596 = vmul.f32 %v1594, %v1594
    %v1597 = vsel %vm192, %v1595, 0.0
    %1598 = vadd.xlane.f32.xlu0 %v1597
    %v1599 = vpop.xlane.xlu0 %1598
    %v1600 = vsel %vm192, %v1596, 0.0
    %1601 = vadd.xlane.f32.xlu0 %v1600
    %v1602 = vpop.xlane.xlu0 %1601
    %v1603 = vmul.f32 %v1599, %v751
    %v1604 = vmul.f32 %v1602, %v751
    %v1605 = vadd.f32 %v1603, 1e-05
    %v1606 = vadd.f32 %v1604, 1e-05
    %v1607 = vrsqrt.pop %v1605
    %v1608 = vrsqrt.pop %v1606
    %v1609 = vmul.f32 %v1593, %v1607
    %v1610 = vmul.f32 %v1594, %v1608
    %v1612 = vlaneseq
    %v1613 = vshrl.u32 %v1612, 7
    %v1614 = vsub.s32 0, %v1613
    %v1615 = vrot.slane %v1583, %v1614
    %v1617 = vmul.f32 %v1609, %v1615
    %v1618 = vmul.f32 %v1610, %v1615
    %v1620 = vlaneseq
    %v1621 = vshrl.u32 %v1620, 7
    %v1622 = vsub.s32 0, %v1621
    %v1623 = vrot.slane %v1584, %v1622
    %v1625 = vadd.f32 %v1617, %v1623
    %v1626 = vadd.f32 %v1618, %v1623
    %v1627 = vld [vmem:[%s1025 + $0x10] sm:$0xff]
    %v1628 = vld [vmem:[%s1025 + $0x30] sm:$0xff]
    %v1629 = vld [vmem:[%s1025 + $0x50] sm:$0xff]
    %v1630 = vld [vmem:[%s1025 + $0x70] sm:$0xff]
    %v1631 = vld [vmem:[%s1030 + $0x4] sm:$0x1]
    %v1633 = vlaneseq
    %v1634 = vshrl.u32 %v1633, 7
    %v1635 = vsub.s32 0, %v1634
    %v1636 = vrot.slane %v1631, %v1635
    %v1639 = vsel %vm192, %v1625, 0
    %v1642 = vsel %vm192, %v1626, 0
    %1644 = vmatprep.subr.mxu0 0.0
    %1645 = vmatpush1.msra.mxu0 0.0
    %1646 = vmatprep.subr.mxu0 0.0
    %1647 = vmatpush1.msra.mxu0 0.0
    %1648 = vmatprep.subr.mxu0 0.0
    %1649 = vmatpush1.msra.mxu0 0.0
    %1650 = vmatprep.subr.mxu0 0.0
    %1651 = vmatpush1.msra.mxu0 0.0
    %1652 = vmatprep.subr.mxu0 0.0
    %1653 = vmatpush1.msra.mxu0 0.0
    %1654 = vmatprep.subr.mxu0 0.0
    %1655 = vmatpush1.msra.mxu0 0.0
    %1656 = vmatprep.subr.mxu0 0.0
    %1657 = vmatpush1.msra.mxu0 0.0
    %1658 = vmatprep.subr.mxu0 0.0
    %1659 = vmatpush1.msra.mxu0 0.0
    %1660 = vmatprep.subr.mxu0 0.0
    %1661 = vmatpush1.msra.mxu0 0.0
    %1662 = vmatprep.subr.mxu0 0.0
    %1663 = vmatpush1.msra.mxu0 0.0
    %1664 = vmatprep.subr.mxu0 0.0
    %1665 = vmatpush1.msra.mxu0 0.0
    %1666 = vmatprep.subr.mxu0 0.0
    %1667 = vmatpush1.msra.mxu0 0.0
    %1668 = vmatprep.subr.mxu0 0.0
    %1669 = vmatpush1.msra.mxu0 %v1630
    %1670 = vmatprep.subr.mxu0 0.0
    %1671 = vmatpush1.msra.mxu0 %v1629
    %1672 = vmatprep.subr.mxu0 0.0
    %1673 = vmatpush1.msra.mxu0 %v1628
    %1674 = vmatprep.subr.mxu0 0.0
    %1675 = vmatpush1.msra.mxu0 %v1627
    %1676 = vmatprep.subr.mxu0 0.0
    %1677 = vmatpush2.msra.mxu0 0.0
    %1678 = vmatprep.subr.mxu0 0.0
    %1679 = vmatpush2.msra.mxu0 0.0
    %1680 = vmatprep.subr.mxu0 0.0
    %1681 = vmatpush2.msra.mxu0 0.0
    %1682 = vmatprep.subr.mxu0 0.0
    %1683 = vmatpush2.msra.mxu0 0.0
    %1684 = vmatprep.subr.mxu0 0.0
    %1685 = vmatpush2.msra.mxu0 0.0
    %1686 = vmatprep.subr.mxu0 0.0
    %1687 = vmatpush2.msra.mxu0 0.0
    %1688 = vmatprep.subr.mxu0 0.0
    %1689 = vmatpush2.msra.mxu0 0.0
    %1690 = vmatprep.subr.mxu0 0.0
    %1691 = vmatpush2.msra.mxu0 0.0
    %1692 = vmatprep.subr.mxu0 0.0
    %1693 = vmatpush2.msra.mxu0 0.0
    %1694 = vmatprep.subr.mxu0 0.0
    %1695 = vmatpush2.msra.mxu0 0.0
    %1696 = vmatprep.subr.mxu0 0.0
    %1697 = vmatpush2.msra.mxu0 0.0
    %1698 = vmatprep.subr.mxu0 0.0
    %1699 = vmatpush2.msra.mxu0 0.0
    %1700 = vmatprep.subr.mxu0 0.0
    %1701 = vmatpush2.msra.mxu0 0.0
    %1702 = vmatprep.subr.mxu0 0.0
    %1703 = vmatpush2.msra.mxu0 0.0
    %1704 = vmatprep.subr.mxu0 0.0
    %1705 = vmatpush2.msra.mxu0 0.0
    %1706 = vmatprep.subr.mxu0 0.0
    %1707 = vmatpush2.msra.mxu0 0.0
    %1708 = vmatprep.mubr.f32.mxu0 0.0
    %1709 = vmatmul.mubr.f32.gmra.mxu0 %v1639
    %v1710 = vpop.f32.mrf.mxu0
    %v1711 = vadd.f32 %v1636, %v1710
    %v1712 = vpop.f32.mrf.mxu0
    %1713 = vmatprep.mubr.f32.mxu0 0.0
    %1714 = vmatmul.mubr.f32.gmra.mxu0 %v1642
    %v1715 = vpop.f32.mrf.mxu0
    %v1716 = vadd.f32 %v1636, %v1715
    %v1717 = vpop.f32.mrf.mxu0
    %1718 = vdwg.mxu0
    %v1719 = vmax.f32 %v1711, 0.0
    %v1720 = vmax.f32 %v1716, 0.0
    %v1721 = vld [vmem:[%s1025 + $0x18] sm:$0xff]
    %v1722 = vld [vmem:[%s1025 + $0x38] sm:$0xff]
    %v1723 = vld [vmem:[%s1025 + $0x58] sm:$0xff]
    %v1724 = vld [vmem:[%s1025 + $0x78] sm:$0xff]
    %v1725 = vld [vmem:[%s1025 + $0x98] sm:$0xff]
    %v1726 = vld [vmem:[%s1025 + $0xb8] sm:$0xff]
    %v1727 = vld [vmem:[%s1025 + $0xd8] sm:$0xff]
    %v1728 = vld [vmem:[%s1025 + $0xf8] sm:$0xff]
    %v1729 = vld [vmem:[%s1030 + $0x5] sm:$0x1]
    %v1731 = vlaneseq
    %v1732 = vshrl.u32 %v1731, 7
    %v1733 = vsub.s32 0, %v1732
    %v1734 = vrot.slane %v1729, %v1733
    %v1737 = vsel %vm897, %v1719, 0
    %v1740 = vsel %vm897, %v1720, 0
    %1742 = vmatprep.subr.mxu0 0.0
    %1743 = vmatpush1.msra.mxu0 0.0
    %1744 = vmatprep.subr.mxu0 0.0
    %1745 = vmatpush1.msra.mxu0 0.0
    %1746 = vmatprep.subr.mxu0 0.0
    %1747 = vmatpush1.msra.mxu0 0.0
    %1748 = vmatprep.subr.mxu0 0.0
    %1749 = vmatpush1.msra.mxu0 0.0
    %1750 = vmatprep.subr.mxu0 0.0
    %1751 = vmatpush1.msra.mxu0 0.0
    %1752 = vmatprep.subr.mxu0 0.0
    %1753 = vmatpush1.msra.mxu0 0.0
    %1754 = vmatprep.subr.mxu0 0.0
    %1755 = vmatpush1.msra.mxu0 0.0
    %1756 = vmatprep.subr.mxu0 0.0
    %1757 = vmatpush1.msra.mxu0 0.0
    %1758 = vmatprep.subr.mxu0 0.0
    %1759 = vmatpush1.msra.mxu0 %v1728
    %1760 = vmatprep.subr.mxu0 0.0
    %1761 = vmatpush1.msra.mxu0 %v1727
    %1762 = vmatprep.subr.mxu0 0.0
    %1763 = vmatpush1.msra.mxu0 %v1726
    %1764 = vmatprep.subr.mxu0 0.0
    %1765 = vmatpush1.msra.mxu0 %v1725
    %1766 = vmatprep.subr.mxu0 0.0
    %1767 = vmatpush1.msra.mxu0 %v1724
    %1768 = vmatprep.subr.mxu0 0.0
    %1769 = vmatpush1.msra.mxu0 %v1723
    %1770 = vmatprep.subr.mxu0 0.0
    %1771 = vmatpush1.msra.mxu0 %v1722
    %1772 = vmatprep.subr.mxu0 0.0
    %1773 = vmatpush1.msra.mxu0 %v1721
    %1774 = vmatprep.subr.mxu0 0.0
    %1775 = vmatpush2.msra.mxu0 0.0
    %1776 = vmatprep.subr.mxu0 0.0
    %1777 = vmatpush2.msra.mxu0 0.0
    %1778 = vmatprep.subr.mxu0 0.0
    %1779 = vmatpush2.msra.mxu0 0.0
    %1780 = vmatprep.subr.mxu0 0.0
    %1781 = vmatpush2.msra.mxu0 0.0
    %1782 = vmatprep.subr.mxu0 0.0
    %1783 = vmatpush2.msra.mxu0 0.0
    %1784 = vmatprep.subr.mxu0 0.0
    %1785 = vmatpush2.msra.mxu0 0.0
    %1786 = vmatprep.subr.mxu0 0.0
    %1787 = vmatpush2.msra.mxu0 0.0
    %1788 = vmatprep.subr.mxu0 0.0
    %1789 = vmatpush2.msra.mxu0 0.0
    %1790 = vmatprep.subr.mxu0 0.0
    %1791 = vmatpush2.msra.mxu0 0.0
    %1792 = vmatprep.subr.mxu0 0.0
    %1793 = vmatpush2.msra.mxu0 0.0
    %1794 = vmatprep.subr.mxu0 0.0
    %1795 = vmatpush2.msra.mxu0 0.0
    %1796 = vmatprep.subr.mxu0 0.0
    %1797 = vmatpush2.msra.mxu0 0.0
    %1798 = vmatprep.subr.mxu0 0.0
    %1799 = vmatpush2.msra.mxu0 0.0
    %1800 = vmatprep.subr.mxu0 0.0
    %1801 = vmatpush2.msra.mxu0 0.0
    %1802 = vmatprep.subr.mxu0 0.0
    %1803 = vmatpush2.msra.mxu0 0.0
    %1804 = vmatprep.subr.mxu0 0.0
    %1805 = vmatpush2.msra.mxu0 0.0
    %1806 = vmatprep.mubr.f32.mxu0 0.0
    %1807 = vmatmul.mubr.f32.gmra.mxu0 %v1737
    %v1808 = vpop.f32.mrf.mxu0
    %v1809 = vadd.f32 %v1734, %v1808
    %v1810 = vpop.f32.mrf.mxu0
    %1811 = vmatprep.mubr.f32.mxu0 0.0
    %1812 = vmatmul.mubr.f32.gmra.mxu0 %v1740
    %v1813 = vpop.f32.mrf.mxu0
    %v1814 = vadd.f32 %v1734, %v1813
    %v1815 = vpop.f32.mrf.mxu0
    %1816 = vdwg.mxu0
    %v1817 = vadd.f32 %v1625, %v1809
    %v1818 = vadd.f32 %v1626, %v1814
    %v1819 = vld [vmem:[%s1030 + $0x6] sm:$0x1]
    %v1820 = vld [vmem:[%s1030 + $0x7] sm:$0x1]
    %v1821 = vsel %vm192, %v1817, 0.0
    %1822 = vadd.xlane.f32.xlu0 %v1821
    %v1823 = vpop.xlane.xlu0 %1822
    %v1824 = vsel %vm192, %v1818, 0.0
    %1825 = vadd.xlane.f32.xlu0 %v1824
    %v1826 = vpop.xlane.xlu0 %1825
    %v1827 = vmul.f32 %v1823, %v751
    %v1828 = vmul.f32 %v1826, %v751
    %v1829 = vsub.f32 %v1817, %v1827
    %v1830 = vsub.f32 %v1818, %v1828
    %v1831 = vmul.f32 %v1829, %v1829
    %v1832 = vmul.f32 %v1830, %v1830
    %v1833 = vsel %vm192, %v1831, 0.0
    %1834 = vadd.xlane.f32.xlu0 %v1833
    %v1835 = vpop.xlane.xlu0 %1834
    %v1836 = vsel %vm192, %v1832, 0.0
    %1837 = vadd.xlane.f32.xlu0 %v1836
    %v1838 = vpop.xlane.xlu0 %1837
    %v1839 = vmul.f32 %v1835, %v751
    %v1840 = vmul.f32 %v1838, %v751
    %v1841 = vadd.f32 %v1839, 1e-05
    %v1842 = vadd.f32 %v1840, 1e-05
    %v1843 = vrsqrt.pop %v1841
    %v1844 = vrsqrt.pop %v1842
    %v1845 = vmul.f32 %v1829, %v1843
    %v1846 = vmul.f32 %v1830, %v1844
    %v1848 = vlaneseq
    %v1849 = vshrl.u32 %v1848, 7
    %v1850 = vsub.s32 0, %v1849
    %v1851 = vrot.slane %v1819, %v1850
    %v1853 = vmul.f32 %v1845, %v1851
    %v1854 = vmul.f32 %v1846, %v1851
    %v1856 = vlaneseq
    %v1857 = vshrl.u32 %v1856, 7
    %v1858 = vsub.s32 0, %v1857
    %v1859 = vrot.slane %v1820, %v1858
    %v1861 = vadd.f32 %v1853, %v1859
    %v1862 = vadd.f32 %v1854, %v1859
    %v1863 = vld [vmem:[#allocation9 + $0x28] sm:$0x3]
    %v1865 = vsel %vm94, %v1863, 0
    %1867 = vmatprep.subr.mxu0 0.0
    %1868 = vmatpush1.msra.mxu0 0.0
    %1869 = vmatprep.subr.mxu0 0.0
    %1870 = vmatpush1.msra.mxu0 0.0
    %1871 = vmatprep.subr.mxu0 0.0
    %1872 = vmatpush1.msra.mxu0 0.0
    %1873 = vmatprep.subr.mxu0 0.0
    %1874 = vmatpush1.msra.mxu0 0.0
    %1875 = vmatprep.subr.mxu0 0.0
    %1876 = vmatpush1.msra.mxu0 0.0
    %1877 = vmatprep.subr.mxu0 0.0
    %1878 = vmatpush1.msra.mxu0 0.0
    %1879 = vmatprep.subr.mxu0 0.0
    %1880 = vmatpush1.msra.mxu0 0.0
    %1881 = vmatprep.subr.mxu0 0.0
    %1882 = vmatpush1.msra.mxu0 0.0
    %1883 = vmatprep.subr.mxu0 0.0
    %1884 = vmatpush1.msra.mxu0 0.0
    %1885 = vmatprep.subr.mxu0 0.0
    %1886 = vmatpush1.msra.mxu0 0.0
    %1887 = vmatprep.subr.mxu0 0.0
    %1888 = vmatpush1.msra.mxu0 0.0
    %1889 = vmatprep.subr.mxu0 0.0
    %1890 = vmatpush1.msra.mxu0 0.0
    %1891 = vmatprep.subr.mxu0 0.0
    %1892 = vmatpush1.msra.mxu0 0.0
    %1893 = vmatprep.subr.mxu0 0.0
    %1894 = vmatpush1.msra.mxu0 0.0
    %1895 = vmatprep.subr.mxu0 0.0
    %1896 = vmatpush1.msra.mxu0 %v1862
    %1897 = vmatprep.subr.mxu0 0.0
    %1898 = vmatpush1.msra.mxu0 %v1861
    %1899 = vmatprep.subr.mxu0 0.0
    %1900 = vmatpush2.msra.mxu0 0.0
    %1901 = vmatprep.subr.mxu0 0.0
    %1902 = vmatpush2.msra.mxu0 0.0
    %1903 = vmatprep.subr.mxu0 0.0
    %1904 = vmatpush2.msra.mxu0 0.0
    %1905 = vmatprep.subr.mxu0 0.0
    %1906 = vmatpush2.msra.mxu0 0.0
    %1907 = vmatprep.subr.mxu0 0.0
    %1908 = vmatpush2.msra.mxu0 0.0
    %1909 = vmatprep.subr.mxu0 0.0
    %1910 = vmatpush2.msra.mxu0 0.0
    %1911 = vmatprep.subr.mxu0 0.0
    %1912 = vmatpush2.msra.mxu0 0.0
    %1913 = vmatprep.subr.mxu0 0.0
    %1914 = vmatpush2.msra.mxu0 0.0
    %1915 = vmatprep.subr.mxu0 0.0
    %1916 = vmatpush2.msra.mxu0 0.0
    %1917 = vmatprep.subr.mxu0 0.0
    %1918 = vmatpush2.msra.mxu0 0.0
    %1919 = vmatprep.subr.mxu0 0.0
    %1920 = vmatpush2.msra.mxu0 0.0
    %1921 = vmatprep.subr.mxu0 0.0
    %1922 = vmatpush2.msra.mxu0 0.0
    %1923 = vmatprep.subr.mxu0 0.0
    %1924 = vmatpush2.msra.mxu0 0.0
    %1925 = vmatprep.subr.mxu0 0.0
    %1926 = vmatpush2.msra.mxu0 0.0
    %1927 = vmatprep.subr.mxu0 0.0
    %1928 = vmatpush2.msra.mxu0 0.0
    %1929 = vmatprep.subr.mxu0 0.0
    %1930 = vmatpush2.msra.mxu0 0.0
    %1931 = vmatprep.mubr.f32.mxu0 0.0
    %1932 = vmatmul.mubr.f32.gmra.mxu0 %v1865
    %v1933 = vpop.f32.mrf.mxu0
    %v1934 = vadd.f32 0.0, %v1933
    %v1935 = vpop.f32.mrf.mxu0
    %1936 = vdwg.mxu0
    %v1937 = vld [vmem:[#allocation9 + $0x30] sm:$0xff]
    %v1938 = vld [vmem:[#allocation9 + $0x38] sm:$0xff]
    %v1939 = vld [vmem:[#allocation9 + $0x40] sm:$0xff]
    %v1940 = vld [vmem:[#allocation9 + $0x48] sm:$0xff]
    %v1941 = vld [vmem:[#allocation9 + $0x50] sm:$0x1]
    %v1942 = vlaneseq
    %v1943 = vshrl.u32 %v1942, 7
    %v1944 = vsub.s32 0, %v1943
    %v1945 = vrot.slane %v1941, %v1944
    %v1947 = vsel %vm192, %v1934, 0
    %1949 = vmatprep.subr.mxu0 0.0
    %1950 = vmatpush1.msra.mxu0 0.0
    %1951 = vmatprep.subr.mxu0 0.0
    %1952 = vmatpush1.msra.mxu0 0.0
    %1953 = vmatprep.subr.mxu0 0.0
    %1954 = vmatpush1.msra.mxu0 0.0
    %1955 = vmatprep.subr.mxu0 0.0
    %1956 = vmatpush1.msra.mxu0 0.0
    %1957 = vmatprep.subr.mxu0 0.0
    %1958 = vmatpush1.msra.mxu0 0.0
    %1959 = vmatprep.subr.mxu0 0.0
    %1960 = vmatpush1.msra.mxu0 0.0
    %1961 = vmatprep.subr.mxu0 0.0
    %1962 = vmatpush1.msra.mxu0 0.0
    %1963 = vmatprep.subr.mxu0 0.0
    %1964 = vmatpush1.msra.mxu0 0.0
    %1965 = vmatprep.subr.mxu0 0.0
    %1966 = vmatpush1.msra.mxu0 0.0
    %1967 = vmatprep.subr.mxu0 0.0
    %1968 = vmatpush1.msra.mxu0 0.0
    %1969 = vmatprep.subr.mxu0 0.0
    %1970 = vmatpush1.msra.mxu0 0.0
    %1971 = vmatprep.subr.mxu0 0.0
    %1972 = vmatpush1.msra.mxu0 0.0
    %1973 = vmatprep.subr.mxu0 0.0
    %1974 = vmatpush1.msra.mxu0 %v1940
    %1975 = vmatprep.subr.mxu0 0.0
    %1976 = vmatpush1.msra.mxu0 %v1939
    %1977 = vmatprep.subr.mxu0 0.0
    %1978 = vmatpush1.msra.mxu0 %v1938
    %1979 = vmatprep.subr.mxu0 0.0
    %1980 = vmatpush1.msra.mxu0 %v1937
    %1981 = vmatprep.subr.mxu0 0.0
    %1982 = vmatpush2.msra.mxu0 0.0
    %1983 = vmatprep.subr.mxu0 0.0
    %1984 = vmatpush2.msra.mxu0 0.0
    %1985 = vmatprep.subr.mxu0 0.0
    %1986 = vmatpush2.msra.mxu0 0.0
    %1987 = vmatprep.subr.mxu0 0.0
    %1988 = vmatpush2.msra.mxu0 0.0
    %1989 = vmatprep.subr.mxu0 0.0
    %1990 = vmatpush2.msra.mxu0 0.0
    %1991 = vmatprep.subr.mxu0 0.0
    %1992 = vmatpush2.msra.mxu0 0.0
    %1993 = vmatprep.subr.mxu0 0.0
    %1994 = vmatpush2.msra.mxu0 0.0
    %1995 = vmatprep.subr.mxu0 0.0
    %1996 = vmatpush2.msra.mxu0 0.0
    %1997 = vmatprep.subr.mxu0 0.0
    %1998 = vmatpush2.msra.mxu0 0.0
    %1999 = vmatprep.subr.mxu0 0.0
    %2000 = vmatpush2.msra.mxu0 0.0
    %2001 = vmatprep.subr.mxu0 0.0
    %2002 = vmatpush2.msra.mxu0 0.0
    %2003 = vmatprep.subr.mxu0 0.0
    %2004 = vmatpush2.msra.mxu0 0.0
    %2005 = vmatprep.subr.mxu0 0.0
    %2006 = vmatpush2.msra.mxu0 0.0
    %2007 = vmatprep.subr.mxu0 0.0
    %2008 = vmatpush2.msra.mxu0 0.0
    %2009 = vmatprep.subr.mxu0 0.0
    %2010 = vmatpush2.msra.mxu0 0.0
    %2011 = vmatprep.subr.mxu0 0.0
    %2012 = vmatpush2.msra.mxu0 0.0
    %2013 = vmatprep.mubr.f32.mxu0 0.0
    %2014 = vmatmul.mubr.f32.gmra.mxu0 %v1947
    %v2015 = vpop.f32.mrf.mxu0
    %v2016 = vadd.f32 %v1945, %v2015
    %v2017 = vpop.f32.mrf.mxu0
    %2018 = vdwg.mxu0
    %2019 = vst [vmem:[%s5] sm:$0x3] %v2016
    // Predicated region
    $region42: #{forward.1} parent=1 // pred_check
      _
    $region43: #{forward.1} parent=1 // pred_check_branch
      %2021 = sbr.rel (0) target = $region45
    $region44: #{forward.1} parent=1 // pred_region
      _
    $region45: #{forward.1} parent=1 // pred_fallthru
      _
    // Predicated region
    $region46: #{forward.1} parent=1 // pred_check
      _
    $region47: #{forward.1} parent=1 // pred_check_branch
      %2023 = sbr.rel (0) target = $region49
    $region48: #{forward.1} parent=1 // pred_region
      _
    $region49: #{forward.1} parent=1 // pred_fallthru
      _
    %2024 = vsyncpa [#allocation3], 1
    %2025 = vsyncpa [#allocation5], 1
    %2026 = vsyncpa [#allocation8], 1

</llo_original>
